<compile_context>
chip_gen: v5e
topology: v5e:2x2
jax: 0.10.0
libtpu: 0.0.40
codegen_flags: <defaults>
</compile_context>

<pallas_src>
import functools

import jax
import jax.numpy as jnp
from jax.experimental import pallas as pl
from jax.experimental.pallas import tpu as pltpu


# --------------------------------------------------------------------------- #
# Kernel
# --------------------------------------------------------------------------- #
def _flash_attn_kernel(*refs, scale, num_heads, head_dim, has_mask):
    if has_mask:
        q_ref, k_ref, v_ref, mask_ref, o_ref, q_scr, m_scr, l_scr, acc_scr = refs
    else:
        q_ref, k_ref, v_ref, o_ref, q_scr, m_scr, l_scr, acc_scr = refs
        mask_ref = None

    ki = pl.program_id(2)
    H, D = num_heads, head_dim
    tq = q_ref.shape[1]
    tk = k_ref.shape[1]

    # Once per (batch, q_tile): init the online-softmax state and cache the scaled,
    # heads-major q tile (reused by every kv tile of this q tile).
    @pl.when(ki == 0)
    def _init():
        q = q_ref[0] * jnp.asarray(scale, q_ref.dtype)           # (tq, H*D) lane-dense
        q_scr[...] = jnp.swapaxes(q.reshape(tq, H, D), 0, 1)      # (H, tq, D)
        m_scr[...] = jnp.full(m_scr.shape, -jnp.inf, dtype=m_scr.dtype)
        l_scr[...] = jnp.zeros(l_scr.shape, dtype=l_scr.dtype)
        acc_scr[...] = jnp.zeros(acc_scr.shape, dtype=acc_scr.dtype)

    # Per kv tile: one heads-major relayout per operand, then batched MXU work.
    k3 = jnp.swapaxes(k_ref[0].reshape(tk, H, D), 0, 1)           # (H, tk, D)
    v3 = jnp.swapaxes(v_ref[0].reshape(tk, H, D), 0, 1)           # (H, tk, D)

    s = jnp.einsum("hqd,hkd->hqk", q_scr[...], k3,
                   preferred_element_type=jnp.float32)            # (H, tq, tk) fp32
    if has_mask:
        # One mask block per (b, q_tile, kv_tile); broadcast over all heads.
        s = s + mask_ref[0, 0].astype(jnp.float32)[None, :, :]

    m_prev = m_scr[...]                                            # (H, tq, 1)
    l_prev = l_scr[...]
    m_new = jnp.maximum(m_prev, jnp.max(s, axis=-1, keepdims=True))
    alpha = jnp.exp(m_prev - m_new)                                # (H, tq, 1)
    # TODO(synk): on v6e/v7x a bf16 exp here (bf16 EUP) would ~2x softmax throughput
    # for head_dim <= 64; kept fp32 for accuracy and v5e compatibility.
    p = jnp.exp(s - m_new)                                         # (H, tq, tk) fp32

    l_scr[...] = alpha * l_prev + jnp.sum(p, axis=-1, keepdims=True)
    m_scr[...] = m_new

    # Probabilities cast back to the value dtype before PV (matches the reference).
    pv = jnp.einsum("hqk,hkd->hqd", p.astype(v3.dtype), v3,
                    preferred_element_type=jnp.float32)            # (H, tq, D) fp32
    acc_scr[...] = alpha * acc_scr[...] + pv

    # Once per (batch, q_tile): normalize and store one lane-dense (tq, H*D) slab.
    @pl.when(ki == pl.num_programs(2) - 1)
    def _finalize():
        inv_l = pl.reciprocal(l_scr[...], approx=False)            # exact; off hot path
        out = acc_scr[...] * inv_l                                 # (H, tq, D) fp32
        o_ref[0] = jnp.swapaxes(out, 0, 1).reshape(tq, H * D).astype(o_ref.dtype)


# --------------------------------------------------------------------------- #
# Tile selection / VMEM accounting
# --------------------------------------------------------------------------- #
def _round_up(x, m):
    return (x + m - 1) // m * m


def _vmem_budget_bytes():
    cap = 64 * 1024 * 1024  # conservative fallback = v7x physical VMEM
    try:
        info = pltpu.get_tpu_info()
        c = getattr(info, "vmem_capacity_bytes", None)
        if c:
            cap = int(c)
    except Exception:
        pass
    # ~25% headroom for Mosaic-internal scratch: ~48 MiB on v7x, ~96 MiB on v5e/v6e.
    return (cap * 3) // 4


def _estimate_vmem(tq, tk, *, hd, num_heads, head_dim, itemsize, mask_itemsize,
                   kv_buffers):
    """Conservative VMEM estimate: pipelined I/O blocks + scratch + fp32 temporaries,
    including lane padding (trailing dims pad to multiples of 128)."""
    f32 = 4
    dpad = _round_up(head_dim, 128)
    tk_pad = _round_up(tk, 128)
    est = 0
    est += 2 * tq * hd * itemsize                        # q block, double-buffered
    est += 2 * tq * hd * itemsize                        # out block, double-buffered
    est += 2 * kv_buffers * tk * hd * itemsize           # k + v blocks
    if mask_itemsize:
        est += kv_buffers * tq * tk_pad * mask_itemsize  # mask block
    est += num_heads * tq * dpad * itemsize              # q_scr (scaled, heads-major)
    est += num_heads * tq * dpad * f32                   # fp32 accumulator
    est += 2 * num_heads * tq * 128 * f32                # m, l (trailing 1 pads to 128)
    est += num_heads * tq * tk_pad * (2 * f32 + itemsize)  # s / p fp32 + cast temporaries
    return est


def _make_spec(shape, index_map, buffers):
    if buffers > 2:
        try:
            return pl.BlockSpec(shape, index_map, pipeline_mode=pl.Buffered(buffers))
        except (TypeError, AttributeError):
            pass
    return pl.BlockSpec(shape, index_map)


# --------------------------------------------------------------------------- #
# Wrapper
# --------------------------------------------------------------------------- #
def core_attention(query, key, value, attention_mask=None, *,
                   q_tile=None, kv_tile=None):
    """CoreAttention forward.

    Args:
      query, key, value: (bs, seq, num_heads, head_dim)
      attention_mask:    optional (bs, 1, seq, seq) additive mask
    Returns:
      (bs, seq, num_heads, head_dim)
    """
    bs, seq, num_heads, head_dim = query.shape
    assert key.shape == query.shape and value.shape == query.shape
    hd = num_heads * head_dim
    scale = float(head_dim) ** (-0.5)

    has_mask = attention_mask is not None
    if has_mask:
        assert attention_mask.shape == (bs, 1, seq, seq)
        # Mask bytes are re-streamed once per q tile; narrow to the activation dtype
        # when wider (the kernel upcasts to fp32 internally).
        if jnp.dtype(attention_mask.dtype).itemsize > jnp.dtype(query.dtype).itemsize:
            attention_mask = attention_mask.astype(query.dtype)

    # Free reshapes of contiguous trailing dims -- no HBM transposes anywhere.
    q = query.reshape(bs, seq, hd)
    k = key.reshape(bs, seq, hd)
    v = value.reshape(bs, seq, hd)

    itemsize = jnp.dtype(query.dtype).itemsize
    mask_itemsize = jnp.dtype(attention_mask.dtype).itemsize if has_mask else 0
    budget = _vmem_budget_bytes()
    est_fn = functools.partial(
        _estimate_vmem, hd=hd, num_heads=num_heads, head_dim=head_dim,
        itemsize=itemsize, mask_itemsize=mask_itemsize)

    def fits(tq_, tk_, buf):
        return est_fn(tq_, tk_, kv_buffers=buf) <= budget

    # Candidates: tq a multiple of 8 (or the full seq); tk a multiple of 128 (or the
    # full seq) so every block -- including the (tq, tk) mask block -- satisfies the
    # (8, 128) rule.
    tq_cands = [c for c in (512, 256, 128, 64, 32, 16, 8) if c < seq and seq % c == 0]
    tq_cands = sorted(set(tq_cands) | {seq}, reverse=True)
    tk_cands = [c for c in (256, 128) if c < seq and seq % c == 0]
    tk_cands = sorted(set(tk_cands) | {seq}, reverse=True)

    if q_tile is not None or kv_tile is not None:
        tq = int(q_tile) if q_tile is not None else tq_cands[0]
        tk = int(kv_tile) if kv_tile is not None else tk_cands[0]
    else:
        tq, tk = tq_cands[-1], tk_cands[-1]
        found = False
        for tq_ in tq_cands:                 # bigger tq first: fewer K/V re-reads
            for tk_ in tk_cands:
                if fits(tq_, tk_, 2):
                    tq, tk, found = tq_, tk_, True
                    break
            if found:
                break
        # v7x megacore: prefer a tq that yields >= 2 (bs * q_tiles) work units so both
        # TensorCores stay busy on small-batch shapes.
        if found and bs * (seq // tq) < 2:
            for tq_ in tq_cands:
                if seq // tq_ < 2:
                    continue
                picked = False
                for tk_ in tk_cands:
                    if fits(tq_, tk_, 2):
                        tq, tk, picked = tq_, tk_, True
                        break
                if picked:
                    break
    assert seq % tq == 0 and seq % tk == 0, (seq, tq, tk)

    # 3-deep K/V (+mask) buffering when the kv loop is long enough and VMEM allows.
    kv_buffers = 3 if (seq // tk >= 3 and fits(tq, tk, 3)) else 2
    est = est_fn(tq, tk, kv_buffers=kv_buffers)
    vmem_limit = int(min(budget, max(32 * 1024 * 1024, int(est * 1.25) + (8 << 20))))

    grid = (bs, seq // tq, seq // tk)

    q_spec = pl.BlockSpec((1, tq, hd), lambda b, qi, ki: (b, qi, 0))
    k_spec = _make_spec((1, tk, hd), lambda b, qi, ki: (b, ki, 0), kv_buffers)
    v_spec = _make_spec((1, tk, hd), lambda b, qi, ki: (b, ki, 0), kv_buffers)
    out_spec = pl.BlockSpec((1, tq, hd), lambda b, qi, ki: (b, qi, 0))

    in_specs = [q_spec, k_spec, v_spec]
    inputs = [q, k, v]
    if has_mask:
        in_specs.append(
            _make_spec((1, 1, tq, tk), lambda b, qi, ki: (b, 0, qi, ki), kv_buffers))
        inputs.append(attention_mask)

    scratch_shapes = [
        pltpu.VMEM((num_heads, tq, head_dim), query.dtype),   # scaled heads-major q
        pltpu.VMEM((num_heads, tq, 1), jnp.float32),          # running max m_i
        pltpu.VMEM((num_heads, tq, 1), jnp.float32),          # running sum l_i
        pltpu.VMEM((num_heads, tq, head_dim), jnp.float32),   # fp32 output accumulator
    ]

    kernel = functools.partial(
        _flash_attn_kernel,
        scale=scale, num_heads=num_heads, head_dim=head_dim, has_mask=has_mask)

    out = pl.pallas_call(
        kernel,
        out_shape=jax.ShapeDtypeStruct((bs, seq, hd), query.dtype),
        grid_spec=pltpu.PrefetchScalarGridSpec(
            num_scalar_prefetch=0,
            grid=grid,
            in_specs=in_specs,
            out_specs=out_spec,
            scratch_shapes=scratch_shapes,
        ),
        compiler_params=pltpu.CompilerParams(
            dimension_semantics=("parallel", "parallel", "arbitrary"),
            vmem_limit_bytes=vmem_limit,
        ),
    )(*inputs)

    # Free reshape back to the module's output layout.
    return out.reshape(bs, seq, num_heads, head_dim)


# --------------------------------------------------------------------------- #
# Reference + self-test
# --------------------------------------------------------------------------- #
def _core_attention_ref(query, key, value, attention_mask, scale):
    q = jnp.transpose(query, (0, 2, 1, 3)).astype(jnp.float32)
    k = jnp.transpose(key, (0, 2, 1, 3)).astype(jnp.float32)
    v = jnp.transpose(value, (0, 2, 1, 3)).astype(jnp.float32)
    s = jnp.einsum("bhqd,bhkd->bhqk", q, k) * scale
    if attention_mask is not None:
        s = s + attention_mask.astype(jnp.float32)
    p = jax.nn.softmax(s, axis=-1)
    o = jnp.einsum("bhqk,bhkd->bhqd", p, v)
    return jnp.transpose(o, (0, 2, 1, 3)).astype(query.dtype)


if __name__ == "__main__":
    # config: hidden_size = 128, num_attention_heads = 4  => head_dim = 32
    bs, seq, num_heads, head_dim = 2, 8, 4, 32
    scale = float(head_dim) ** (-0.5)

    key0 = jax.random.PRNGKey(0)
    kq, kk, kv, km = jax.random.split(key0, 4)
    query = jax.random.normal(kq, (bs, seq, num_heads, head_dim), dtype=jnp.float32)
    key_ = jax.random.normal(kk, (bs, seq, num_heads, head_dim), dtype=jnp.float32)
    value = jax.random.normal(kv, (bs, seq, num_heads, head_dim), dtype=jnp.float32)
    attention_mask = jax.random.normal(km, (bs, 1, seq, seq), dtype=jnp.float32)

    # Masked path.
    out = jax.block_until_ready(core_attention(query, key_, value, attention_mask))
    ref = _core_attention_ref(query, key_, value, attention_mask, scale)
    assert out.shape == (bs, seq, num_heads, head_dim)
    assert jnp.allclose(out, ref, atol=5e-5, rtol=5e-5), "mismatch (masked, seq=8)"

    # Mask-free fast path (no zeros mask is materialized or streamed).
    out_nm = jax.block_until_ready(core_attention(query, key_, value, None))
    ref_nm = _core_attention_ref(query, key_, value, None, scale)
    assert jnp.allclose(out_nm, ref_nm, atol=5e-5, rtol=5e-5), "mismatch (no mask, seq=8)"

    # Slightly larger shape exercising multi-kv-tile online-softmax accumulation.
    bs2, seq2 = 1, 256
    kq2, kk2, kv2, km2 = jax.random.split(jax.random.PRNGKey(1), 4)
    q2 = jax.random.normal(kq2, (bs2, seq2, num_heads, head_dim), dtype=jnp.float32)
    k2 = jax.random.normal(kk2, (bs2, seq2, num_heads, head_dim), dtype=jnp.float32)
    v2 = jax.random.normal(kv2, (bs2, seq2, num_heads, head_dim), dtype=jnp.float32)
    m2 = jax.random.normal(km2, (bs2, 1, seq2, seq2), dtype=jnp.float32)
    out2 = jax.block_until_ready(core_attention(q2, k2, v2, m2, kv_tile=128))
    ref2 = _core_attention_ref(q2, k2, v2, m2, scale)
    assert jnp.allclose(out2, ref2, atol=1e-4, rtol=1e-4), "mismatch (masked, seq=256)"

    print("KERNEL_OK")
</pallas_src>

<mosaic_0001>
module attributes {stable_mosaic.version = 11 : i64} {
  func.func @_flash_attn_kernel(%arg0: i32, %arg1: i32, %arg2: i32, %arg3: memref<1x8x128xf32, #tpu.memory_space<vmem>>, %arg4: memref<1x8x128xf32, #tpu.memory_space<vmem>>, %arg5: memref<1x8x128xf32, #tpu.memory_space<vmem>>, %arg6: memref<1x1x8x8xf32, #tpu.memory_space<vmem>>, %arg7: memref<1x8x128xf32, #tpu.memory_space<vmem>>, %arg8: memref<4x8x32xf32, #tpu.memory_space<vmem>>, %arg9: memref<4x8x1xf32, #tpu.memory_space<vmem>>, %arg10: memref<4x8x1xf32, #tpu.memory_space<vmem>>, %arg11: memref<4x8x32xf32, #tpu.memory_space<vmem>>) attributes {dimension_semantics = [#tpu.dimension_semantics<parallel>, #tpu.dimension_semantics<parallel>, #tpu.dimension_semantics<arbitrary>], iteration_bounds = array<i64: 2, 1, 1>, scalar_prefetch = 0 : i64, scratch_operands = 4 : i64, tpu.core_type = #tpu.core_type<tc>, window_params = [{transform_indices = @transform_0, window_bounds = array<i64: 1, 8, 128>}, {transform_indices = @transform_1, window_bounds = array<i64: 1, 8, 128>}, {transform_indices = @transform_2, window_bounds = array<i64: 1, 8, 128>}, {transform_indices = @transform_3, window_bounds = array<i64: 1, 1, 8, 8>}, {transform_indices = @transform_4, window_bounds = array<i64: 1, 8, 128>}]} {
    %c0_i32 = arith.constant 0 : i32
    %0 = arith.cmpi eq, %arg2, %c0_i32 : i32
    %1 = arith.extui %0 : i1 to i32
    %c0_i32_0 = arith.constant 0 : i32
    %2 = arith.cmpi ne, %1, %c0_i32_0 : i32
    scf.if %2 {
      %c0_36 = arith.constant 0 : index
      %c0_37 = arith.constant 0 : index
      %c0_38 = arith.constant 0 : index
      %43 = vector.load %arg3[%c0_36, %c0_37, %c0_38] : memref<1x8x128xf32, #tpu.memory_space<vmem>>, vector<1x8x128xf32>
      %44 = vector.shape_cast %43 : vector<1x8x128xf32> to vector<8x128xf32>
      %cst_39 = arith.constant 0.176776692 : f32
      %45 = vector.broadcast %cst_39 : f32 to vector<8x128xf32>
      %46 = arith.mulf %44, %45 : vector<8x128xf32>
      %47 = vector.shape_cast %46 : vector<8x128xf32> to vector<8x4x32xf32>
      %48 = tpu.transpose %47, [1, 0, 2] : vector<8x4x32xf32> -> vector<4x8x32xf32>
      %c0_40 = arith.constant 0 : index
      %c0_41 = arith.constant 0 : index
      %c0_42 = arith.constant 0 : index
      %49 = vector.load %arg8[%c0_40, %c0_41, %c0_42] : memref<4x8x32xf32, #tpu.memory_space<vmem>>, vector<4x8x32xf32>
      tpu.vector_store %arg8[%c0_40, %c0_41, %c0_42], %48 {strides = array<i32>} : memref<4x8x32xf32, #tpu.memory_space<vmem>>, vector<4x8x32xf32>,
      %cst_43 = arith.constant 0xFF800000 : f32
      %50 = vector.broadcast %cst_43 : f32 to vector<4x8x1xf32>
      %c0_44 = arith.constant 0 : index
      %c0_45 = arith.constant 0 : index
      %c0_46 = arith.constant 0 : index
      %51 = vector.load %arg9[%c0_44, %c0_45, %c0_46] : memref<4x8x1xf32, #tpu.memory_space<vmem>>, vector<4x8x1xf32>
      tpu.vector_store %arg9[%c0_44, %c0_45, %c0_46], %50 {strides = array<i32>} : memref<4x8x1xf32, #tpu.memory_space<vmem>>, vector<4x8x1xf32>,
      %cst_47 = arith.constant 0.000000e+00 : f32
      %52 = vector.broadcast %cst_47 : f32 to vector<4x8x1xf32>
      %c0_48 = arith.constant 0 : index
      %c0_49 = arith.constant 0 : index
      %c0_50 = arith.constant 0 : index
      %53 = vector.load %arg10[%c0_48, %c0_49, %c0_50] : memref<4x8x1xf32, #tpu.memory_space<vmem>>, vector<4x8x1xf32>
      tpu.vector_store %arg10[%c0_48, %c0_49, %c0_50], %52 {strides = array<i32>} : memref<4x8x1xf32, #tpu.memory_space<vmem>>, vector<4x8x1xf32>,
      %cst_51 = arith.constant 0.000000e+00 : f32
      %54 = vector.broadcast %cst_51 : f32 to vector<4x8x32xf32>
      %c0_52 = arith.constant 0 : index
      %c0_53 = arith.constant 0 : index
      %c0_54 = arith.constant 0 : index
      %55 = vector.load %arg11[%c0_52, %c0_53, %c0_54] : memref<4x8x32xf32, #tpu.memory_space<vmem>>, vector<4x8x32xf32>
      tpu.vector_store %arg11[%c0_52, %c0_53, %c0_54], %54 {strides = array<i32>} : memref<4x8x32xf32, #tpu.memory_space<vmem>>, vector<4x8x32xf32>,
    } else {
    }
    %c0 = arith.constant 0 : index
    %c0_1 = arith.constant 0 : index
    %c0_2 = arith.constant 0 : index
    %3 = vector.load %arg4[%c0, %c0_1, %c0_2] : memref<1x8x128xf32, #tpu.memory_space<vmem>>, vector<1x8x128xf32>
    %4 = vector.shape_cast %3 : vector<1x8x128xf32> to vector<8x128xf32>
    %5 = vector.shape_cast %4 : vector<8x128xf32> to vector<8x4x32xf32>
    %6 = tpu.transpose %5, [1, 0, 2] : vector<8x4x32xf32> -> vector<4x8x32xf32>
    %c0_3 = arith.constant 0 : index
    %c0_4 = arith.constant 0 : index
    %c0_5 = arith.constant 0 : index
    %7 = vector.load %arg5[%c0_3, %c0_4, %c0_5] : memref<1x8x128xf32, #tpu.memory_space<vmem>>, vector<1x8x128xf32>
    %8 = vector.shape_cast %7 : vector<1x8x128xf32> to vector<8x128xf32>
    %9 = vector.shape_cast %8 : vector<8x128xf32> to vector<8x4x32xf32>
    %10 = tpu.transpose %9, [1, 0, 2] : vector<8x4x32xf32> -> vector<4x8x32xf32>
    %c0_6 = arith.constant 0 : index
    %c0_7 = arith.constant 0 : index
    %c0_8 = arith.constant 0 : index
    %11 = vector.load %arg8[%c0_6, %c0_7, %c0_8] : memref<4x8x32xf32, #tpu.memory_space<vmem>>, vector<4x8x32xf32>
    "tpu.trace_start"() <{level = 10 : i32, message = "hqd,hkd->hqk"}> : () -> ()
    %cst = arith.constant dense<0.000000e+00> : vector<4x8x8xf32>
    %12 = tpu.matmul %11, %6, %cst {dimension_numbers = #tpu.dot_dimension_numbers<[2], [2], [1], [1], [0, 0, 0, 1, 1, 1], [0], [0]>} : vector<4x8x32xf32>, vector<4x8x32xf32>, vector<4x8x8xf32> -> vector<4x8x8xf32>
    "tpu.trace_stop"() : () -> ()
    %c0_9 = arith.constant 0 : index
    %c0_10 = arith.constant 0 : index
    %c0_11 = arith.constant 0 : index
    %c0_12 = arith.constant 0 : index
    %13 = vector.load %arg6[%c0_9, %c0_10, %c0_11, %c0_12] : memref<1x1x8x8xf32, #tpu.memory_space<vmem>>, vector<1x1x8x8xf32>
    %14 = vector.shape_cast %13 : vector<1x1x8x8xf32> to vector<8x8xf32>
    %15 = vector.shape_cast %14 : vector<8x8xf32> to vector<1x8x8xf32>
    %16 = vector.broadcast %15 : vector<1x8x8xf32> to vector<4x8x8xf32>
    %17 = arith.addf %12, %16 : vector<4x8x8xf32>
    %c0_13 = arith.constant 0 : index
    %c0_14 = arith.constant 0 : index
    %c0_15 = arith.constant 0 : index
    %18 = vector.load %arg9[%c0_13, %c0_14, %c0_15] : memref<4x8x1xf32, #tpu.memory_space<vmem>>, vector<4x8x1xf32>
    %c0_16 = arith.constant 0 : index
    %c0_17 = arith.constant 0 : index
    %c0_18 = arith.constant 0 : index
    %19 = vector.load %arg10[%c0_16, %c0_17, %c0_18] : memref<4x8x1xf32, #tpu.memory_space<vmem>>, vector<4x8x1xf32>
    %cst_19 = arith.constant dense<0xFF800000> : vector<4x8xf32>
    %20 = vector.multi_reduction <maximumf>, %17, %cst_19 [2] : vector<4x8x8xf32> to vector<4x8xf32>
    %21 = vector.shape_cast %20 : vector<4x8xf32> to vector<4x8x1xf32>
    %22 = arith.maximumf %18, %21 : vector<4x8x1xf32>
    %23 = arith.subf %18, %22 : vector<4x8x1xf32>
    %24 = math.exp %23 : vector<4x8x1xf32>
    %25 = vector.broadcast %22 : vector<4x8x1xf32> to vector<4x8x8xf32>
    %26 = arith.subf %17, %25 : vector<4x8x8xf32>
    %27 = math.exp %26 : vector<4x8x8xf32>
    %28 = arith.mulf %24, %19 : vector<4x8x1xf32>
    %cst_20 = arith.constant dense<0.000000e+00> : vector<4x8xf32>
    %29 = vector.multi_reduction <add>, %27, %cst_20 [2] : vector<4x8x8xf32> to vector<4x8xf32>
    %30 = vector.shape_cast %29 : vector<4x8xf32> to vector<4x8x1xf32>
    %31 = arith.addf %28, %30 : vector<4x8x1xf32>
    %c0_21 = arith.constant 0 : index
    %c0_22 = arith.constant 0 : index
    %c0_23 = arith.constant 0 : index
    %32 = vector.load %arg10[%c0_21, %c0_22, %c0_23] : memref<4x8x1xf32, #tpu.memory_space<vmem>>, vector<4x8x1xf32>
    tpu.vector_store %arg10[%c0_21, %c0_22, %c0_23], %31 {strides = array<i32>} : memref<4x8x1xf32, #tpu.memory_space<vmem>>, vector<4x8x1xf32>,
    %c0_24 = arith.constant 0 : index
    %c0_25 = arith.constant 0 : index
    %c0_26 = arith.constant 0 : index
    %33 = vector.load %arg9[%c0_24, %c0_25, %c0_26] : memref<4x8x1xf32, #tpu.memory_space<vmem>>, vector<4x8x1xf32>
    tpu.vector_store %arg9[%c0_24, %c0_25, %c0_26], %22 {strides = array<i32>} : memref<4x8x1xf32, #tpu.memory_space<vmem>>, vector<4x8x1xf32>,
    "tpu.trace_start"() <{level = 10 : i32, message = "hqk,hkd->hqd"}> : () -> ()
    %cst_27 = arith.constant dense<0.000000e+00> : vector<4x8x32xf32>
    %34 = tpu.matmul %27, %10, %cst_27 {dimension_numbers = #tpu.dot_dimension_numbers<[2], [1], [1], [2], [0, 0, 0, 1, 1, 2], [0], [0]>} : vector<4x8x8xf32>, vector<4x8x32xf32>, vector<4x8x32xf32> -> vector<4x8x32xf32>
    "tpu.trace_stop"() : () -> ()
    %c0_28 = arith.constant 0 : index
    %c0_29 = arith.constant 0 : index
    %c0_30 = arith.constant 0 : index
    %35 = vector.load %arg11[%c0_28, %c0_29, %c0_30] : memref<4x8x32xf32, #tpu.memory_space<vmem>>, vector<4x8x32xf32>
    %36 = vector.broadcast %24 : vector<4x8x1xf32> to vector<4x8x32xf32>
    %37 = arith.mulf %36, %35 : vector<4x8x32xf32>
    %38 = arith.addf %37, %34 : vector<4x8x32xf32>
    %c0_31 = arith.constant 0 : index
    %c0_32 = arith.constant 0 : index
    %c0_33 = arith.constant 0 : index
    %39 = vector.load %arg11[%c0_31, %c0_32, %c0_33] : memref<4x8x32xf32, #tpu.memory_space<vmem>>, vector<4x8x32xf32>
    tpu.vector_store %arg11[%c0_31, %c0_32, %c0_33], %38 {strides = array<i32>} : memref<4x8x32xf32, #tpu.memory_space<vmem>>, vector<4x8x32xf32>,
    %c0_i32_34 = arith.constant 0 : i32
    %40 = arith.cmpi eq, %arg2, %c0_i32_34 : i32
    %41 = arith.extui %40 : i1 to i32
    %c0_i32_35 = arith.constant 0 : i32
    %42 = arith.cmpi ne, %41, %c0_i32_35 : i32
    scf.if %42 {
      %c0_36 = arith.constant 0 : index
      %c0_37 = arith.constant 0 : index
      %c0_38 = arith.constant 0 : index
      %43 = vector.load %arg10[%c0_36, %c0_37, %c0_38] : memref<4x8x1xf32, #tpu.memory_space<vmem>>, vector<4x8x1xf32>
      %44 = tpu.reciprocal %43 : vector<4x8x1xf32> -> vector<4x8x1xf32>
      %c0_39 = arith.constant 0 : index
      %c0_40 = arith.constant 0 : index
      %c0_41 = arith.constant 0 : index
      %45 = vector.load %arg11[%c0_39, %c0_40, %c0_41] : memref<4x8x32xf32, #tpu.memory_space<vmem>>, vector<4x8x32xf32>
      %46 = vector.broadcast %44 : vector<4x8x1xf32> to vector<4x8x32xf32>
      %47 = arith.mulf %45, %46 : vector<4x8x32xf32>
      %48 = tpu.transpose %47, [1, 0, 2] : vector<4x8x32xf32> -> vector<8x4x32xf32>
      %49 = vector.shape_cast %48 : vector<8x4x32xf32> to vector<8x128xf32>
      %c0_42 = arith.constant 0 : index
      %c0_43 = arith.constant 0 : index
      %c0_44 = arith.constant 0 : index
      %50 = vector.load %arg7[%c0_42, %c0_43, %c0_44] : memref<1x8x128xf32, #tpu.memory_space<vmem>>, vector<1x8x128xf32>
      %51 = vector.shape_cast %50 : vector<1x8x128xf32> to vector<8x128xf32>
      %52 = vector.shape_cast %49 : vector<8x128xf32> to vector<1x8x128xf32>
      tpu.vector_store %arg7[%c0_42, %c0_43, %c0_44], %52 {strides = array<i32>} : memref<1x8x128xf32, #tpu.memory_space<vmem>>, vector<1x8x128xf32>,
    } else {
    }
    return
  }
  func.func @transform_0(%arg0: i32, %arg1: i32, %arg2: i32) -> (i32, i32, i32) {
    %c0_i32 = arith.constant 0 : i32
    %c0_i32_0 = arith.constant 0 : i32
    return %arg0, %arg1, %c0_i32 : i32, i32, i32
  }
  func.func @transform_1(%arg0: i32, %arg1: i32, %arg2: i32) -> (i32, i32, i32) {
    %c0_i32 = arith.constant 0 : i32
    %c0_i32_0 = arith.constant 0 : i32
    return %arg0, %arg2, %c0_i32 : i32, i32, i32
  }
  func.func @transform_2(%arg0: i32, %arg1: i32, %arg2: i32) -> (i32, i32, i32) {
    %c0_i32 = arith.constant 0 : i32
    %c0_i32_0 = arith.constant 0 : i32
    return %arg0, %arg2, %c0_i32 : i32, i32, i32
  }
  func.func @transform_3(%arg0: i32, %arg1: i32, %arg2: i32) -> (i32, i32, i32, i32) {
    %c0_i32 = arith.constant 0 : i32
    %c0_i32_0 = arith.constant 0 : i32
    return %arg0, %c0_i32, %arg1, %arg2 : i32, i32, i32, i32
  }
  func.func @transform_4(%arg0: i32, %arg1: i32, %arg2: i32) -> (i32, i32, i32) {
    %c0_i32 = arith.constant 0 : i32
    %c0_i32_0 = arith.constant 0 : i32
    return %arg0, %arg1, %c0_i32 : i32, i32, i32
  }
}

</mosaic_0001>

<llo_original>
// kernel: tpu_custom_call.1
$region0: #{tpu_custom_call.1}
  #allocation0 [shape = 'u32[]', space=smem, size = 0x4, offset = 0x4, fixed_abs, tag = 'smem constant byte address 0x4 - core index']
  #allocation1 [shape = 'u32[72,128]{1,0:T(1,128)}', space=vmem, size = 0x9000, scoped, tag = 'internal scratch']
  #allocation2 [shape = 'f32[4,8,32]{2,1,0:T(8,128)}', space=vmem, size = 0x4000, scoped, tag = 'scratch operand']
  #allocation3 [shape = 'f32[4,8,1]{2,1,0:T(8,128)}', space=vmem, size = 0x4000, scoped, tag = 'scratch operand']
  #allocation4 [shape = 'f32[4,8,1]{2,1,0:T(8,128)}', space=vmem, size = 0x4000, scoped, tag = 'scratch operand']
  #allocation5 [shape = 'f32[4,8,32]{2,1,0:T(8,128)}', space=vmem, size = 0x4000, scoped, tag = 'scratch operand']
  %s0 = inlined_call_operand.hbm [shape: f32[2,8,128], index: 0, kind: input, shape index: {}]
  %s1 = inlined_call_operand.hbm [shape: f32[2,8,128], index: 1, kind: input, shape index: {}]
  %s2 = inlined_call_operand.hbm [shape: f32[2,8,128], index: 2, kind: input, shape index: {}]
  %s3 = inlined_call_operand.hbm [shape: f32[2,1,8,8], index: 3, kind: input, shape index: {}]
  %s4 = inlined_call_operand.hbm [shape: f32[2,8,128], index: 4, kind: output, shape index: {}]
  %s5 = sld [smem:[#allocation0]]
  $region73: #{tpu_custom_call.1} parent=0
    _
  %s7 = ssub.s32 1, %s5
  %s8 = scalar_select 0, %s7, %s5
  $region1: #{tpu_custom_call.1} parent=0
    #allocation6 [shape = 'u8[8192]{0}', space=vmem, size = 0x2000, scoped, tag = 'input window, operand 0']
    #allocation7 [shape = 's32[2]{0}', space=sflag, size = 0x8, scoped, tag = 'scoped memory for tpu_custom_call.1']
    #allocation8 [shape = 's32[2]{0}', space=sflag, size = 0x8, scoped, tag = 'scoped memory for tpu_custom_call.1']
    #allocation9 [shape = 'u8[8192]{0}', space=vmem, size = 0x2000, scoped, tag = 'input window, operand 1']
    #allocation10 [shape = 's32[2]{0}', space=sflag, size = 0x8, scoped, tag = 'scoped memory for tpu_custom_call.1']
    #allocation11 [shape = 'u8[8192]{0}', space=vmem, size = 0x2000, scoped, tag = 'input window, operand 2']
    #allocation12 [shape = 'u8[8192]{0}', space=vmem, size = 0x2000, scoped, tag = 'input window, operand 3']
    #allocation13 [shape = 's32[2]{0}', space=sflag, size = 0x8, scoped, tag = 'scoped memory for tpu_custom_call.1']
    #allocation14 [shape = 'u8[8192]{0}', space=vmem, size = 0x2000, scoped, tag = 'output window, operand 0']
    %9 = vsyncpa [#allocation7], 0
    %s10 = scalar_lea.sflag [#allocation7], 1
    %11 = vsyncpa %s10, 0
    %12 = vsyncpa [#allocation10], 0
    %s13 = scalar_lea.sflag [#allocation10], 1
    %14 = vsyncpa %s13, 0
    %15 = vsyncpa [#allocation13], 0
    %s16 = scalar_lea.sflag [#allocation13], 1
    %17 = vsyncpa %s16, 0
    %18 = vsyncpa [#allocation8], 0
    %s19 = scalar_lea.sflag [#allocation8], 1
    %20 = vsyncpa %s19, 0
    loop: start=0, step=1, limit=4
    $region2: #{tpu_custom_call.1} parent=1 // loop_pre_header
      _
    $region3: #{tpu_custom_call.1} parent=1 // loop_header
      %s22 = sphi 0, %s26
      %p23 = scmp.ge.s32.totalorder %s22, 4
      %s29 = sphi 0, %s48
      %s30 = sphi 0, %s44
      %s31 = sphi 0, %s40
      %s32 = sphi 0, %s29
      %s33 = sphi 0, %s30
      %s34 = sphi 0, %s31
      %s35 = sphi 0, %s32
      %s36 = sphi 0, %s33
      %s37 = sphi 0, %s34
      %s53 = sphi 0, %s55
      %s56 = sphi 0, %s53
      %s57 = sphi 0, %s56
      %s73 = sphi 0, %s57
      %s81 = sphi 0, %s83
      %s84 = sphi 0, %s81
      %s85 = sphi 0, %s84
      %s101 = sphi 0, %s85
      %s109 = sphi 0, %s111
      %s112 = sphi 0, %s109
      %s113 = sphi 0, %s112
      %s129 = sphi 0, %s113
      %s139 = sphi 0, %s141
      %s142 = sphi 0, %s139
      %s143 = sphi 0, %s142
      %s159 = sphi 0, %s143
      %s167 = sphi 0, %s169
      %s170 = sphi 0, %s167
      %s171 = sphi 0, %s170
      %s187 = sphi 0, %s171
    $region4: #{tpu_custom_call.1} parent=1 // loop_header_branch
      %25 = sbr.rel (%p23) target = $region8
    $region5: #{tpu_custom_call.1} parent=1 // loop_body
      %s27 = ssub.s32 %s22, 1
      %s28 = ssub.s32 %s22, 2
      %s38 = sadd.s32 1, %s31
      %p39 = scmp.ge.s32.totalorder %s38, 1
      %s40 = scalar_select %p39, 0, %s38
      %s41 = sadd.s32 1, %s30
      %s42 = scalar_select %p39, %s41, %s30
      %p43 = scmp.ge.s32.totalorder %s42, 1
      %s44 = scalar_select %p43, 0, %s42
      %s45 = sadd.s32 1, %s29
      %s46 = scalar_select %p43, %s45, %s29
      %p47 = scmp.ge.s32.totalorder %s46, 2
      %s48 = scalar_select %p47, 0, %s46
      %s49 = ssub.s32 %s29, %s48
      %s50 = ssub.s32 %s30, %s44
      %s51 = sor.u32 %s49, %s50
      %p52 = scmp.eq.s32.totalorder %s51, 0
      %s54 = sadd.s32 %s53, 1
      %s55 = scalar_select %p52, %s53, %s54
      %p58 = pneg %p52
      %p59 = scmp.eq.s32.totalorder %s22, 1
      %p60 = por %p58, %p59
      %p61 = scmp.ne.s32.totalorder %s53, %s56
      %p62 = scmp.eq.s32.totalorder %s22, 0
      %p63 = por %p61, %p62
      %p64 = scmp.ne.s32.totalorder %s53, %s56
      %p65 = scmp.eq.s32.totalorder %s27, 1
      %p66 = por %p64, %p65
      %p67 = scmp.ne.s32.totalorder %s56, %s57
      %p68 = scmp.eq.s32.totalorder %s27, 0
      %p69 = por %p67, %p68
      %p70 = scmp.ne.s32.totalorder %s56, %s57
      %p71 = scmp.eq.s32.totalorder %s28, 1
      %p72 = por %p70, %p71
      %p74 = scmp.ne.s32.totalorder %s57, %s73
      %p75 = scmp.eq.s32.totalorder %s28, 0
      %p76 = por %p74, %p75
      %s77 = ssub.s32 %s29, %s48
      %s78 = ssub.s32 %s31, %s40
      %s79 = sor.u32 %s77, %s78
      %p80 = scmp.eq.s32.totalorder %s79, 0
      %s82 = sadd.s32 %s81, 1
      %s83 = scalar_select %p80, %s81, %s82
      %p86 = pneg %p80
      %p87 = scmp.eq.s32.totalorder %s22, 1
      %p88 = por %p86, %p87
      %p89 = scmp.ne.s32.totalorder %s81, %s84
      %p90 = scmp.eq.s32.totalorder %s22, 0
      %p91 = por %p89, %p90
      %p92 = scmp.ne.s32.totalorder %s81, %s84
      %p93 = scmp.eq.s32.totalorder %s27, 1
      %p94 = por %p92, %p93
      %p95 = scmp.ne.s32.totalorder %s84, %s85
      %p96 = scmp.eq.s32.totalorder %s27, 0
      %p97 = por %p95, %p96
      %p98 = scmp.ne.s32.totalorder %s84, %s85
      %p99 = scmp.eq.s32.totalorder %s28, 1
      %p100 = por %p98, %p99
      %p102 = scmp.ne.s32.totalorder %s85, %s101
      %p103 = scmp.eq.s32.totalorder %s28, 0
      %p104 = por %p102, %p103
      %s105 = ssub.s32 %s29, %s48
      %s106 = ssub.s32 %s31, %s40
      %s107 = sor.u32 %s105, %s106
      %p108 = scmp.eq.s32.totalorder %s107, 0
      %s110 = sadd.s32 %s109, 1
      %s111 = scalar_select %p108, %s109, %s110
      %p114 = pneg %p108
      %p115 = scmp.eq.s32.totalorder %s22, 1
      %p116 = por %p114, %p115
      %p117 = scmp.ne.s32.totalorder %s109, %s112
      %p118 = scmp.eq.s32.totalorder %s22, 0
      %p119 = por %p117, %p118
      %p120 = scmp.ne.s32.totalorder %s109, %s112
      %p121 = scmp.eq.s32.totalorder %s27, 1
      %p122 = por %p120, %p121
      %p123 = scmp.ne.s32.totalorder %s112, %s113
      %p124 = scmp.eq.s32.totalorder %s27, 0
      %p125 = por %p123, %p124
      %p126 = scmp.ne.s32.totalorder %s112, %s113
      %p127 = scmp.eq.s32.totalorder %s28, 1
      %p128 = por %p126, %p127
      %p130 = scmp.ne.s32.totalorder %s113, %s129
      %p131 = scmp.eq.s32.totalorder %s28, 0
      %p132 = por %p130, %p131
      %s133 = ssub.s32 %s29, %s48
      %s134 = ssub.s32 %s30, %s44
      %s135 = sor.u32 %s133, %s134
      %s136 = ssub.s32 %s31, %s40
      %s137 = sor.u32 %s135, %s136
      %p138 = scmp.eq.s32.totalorder %s137, 0
      %s140 = sadd.s32 %s139, 1
      %s141 = scalar_select %p138, %s139, %s140
      %p144 = pneg %p138
      %p145 = scmp.eq.s32.totalorder %s22, 1
      %p146 = por %p144, %p145
      %p147 = scmp.ne.s32.totalorder %s139, %s142
      %p148 = scmp.eq.s32.totalorder %s22, 0
      %p149 = por %p147, %p148
      %p150 = scmp.ne.s32.totalorder %s139, %s142
      %p151 = scmp.eq.s32.totalorder %s27, 1
      %p152 = por %p150, %p151
      %p153 = scmp.ne.s32.totalorder %s142, %s143
      %p154 = scmp.eq.s32.totalorder %s27, 0
      %p155 = por %p153, %p154
      %p156 = scmp.ne.s32.totalorder %s142, %s143
      %p157 = scmp.eq.s32.totalorder %s28, 1
      %p158 = por %p156, %p157
      %p160 = scmp.ne.s32.totalorder %s143, %s159
      %p161 = scmp.eq.s32.totalorder %s28, 0
      %p162 = por %p160, %p161
      %s163 = ssub.s32 %s29, %s48
      %s164 = ssub.s32 %s30, %s44
      %s165 = sor.u32 %s163, %s164
      %p166 = scmp.eq.s32.totalorder %s165, 0
      %s168 = sadd.s32 %s167, 1
      %s169 = scalar_select %p166, %s167, %s168
      %p172 = pneg %p166
      %p173 = scmp.eq.s32.totalorder %s22, 1
      %p174 = por %p172, %p173
      %p175 = scmp.ne.s32.totalorder %s167, %s170
      %p176 = scmp.eq.s32.totalorder %s22, 0
      %p177 = por %p175, %p176
      %p178 = scmp.ne.s32.totalorder %s167, %s170
      %p179 = scmp.eq.s32.totalorder %s27, 1
      %p180 = por %p178, %p179
      %p181 = scmp.ne.s32.totalorder %s170, %s171
      %p182 = scmp.eq.s32.totalorder %s27, 0
      %p183 = por %p181, %p182
      %p184 = scmp.ne.s32.totalorder %s170, %s171
      %p185 = scmp.eq.s32.totalorder %s28, 1
      %p186 = por %p184, %p185
      %p188 = scmp.ne.s32.totalorder %s171, %s187
      %p189 = scmp.eq.s32.totalorder %s28, 0
      %p190 = por %p188, %p189
      %p191 = scmp.le.s32.totalorder 1, %s22
      %p192 = scmp.lt.s32.totalorder %s22, 3
      %p193 = pnand %p191, %p192
      %p194 = pneg %p193
      // Predicated region
      $region9: #{tpu_custom_call.1} parent=5 // pred_check
        _
      $region10: #{tpu_custom_call.1} parent=5 // pred_check_branch
        %196 = sbr.rel (%p193) target = $region12
      $region11: #{tpu_custom_call.1} parent=5 // pred_region
        %s197 = ssub.s32 %s22, 1
      $region12: #{tpu_custom_call.1} parent=5 // pred_fallthru
        _
      %p198 = scmp.lt.s32.totalorder %s22, 2
      // Predicated region
      $region13: #{tpu_custom_call.1} parent=5 // pred_check
        %p199 = pneg %p198
      $region14: #{tpu_custom_call.1} parent=5 // pred_check_branch
        %201 = sbr.rel (%p199) target = $region16
      $region15: #{tpu_custom_call.1} parent=5 // pred_region
        // Predicated region
        $region17: #{tpu_custom_call.1} parent=15 // pred_check
          %p202 = pneg %p63
        $region18: #{tpu_custom_call.1} parent=15 // pred_check_branch
          %204 = sbr.rel (%p202) target = $region20
        $region19: #{tpu_custom_call.1} parent=15 // pred_region
          %s205 = sand.u32 %s53, 1
          %s206 = scalar_lea.sflag [#allocation7], %s205
          %s207 = sand.u32 %s53, 1
          %s208 = smul.addr %s207, 8
          %s209 = scalar_lea.vmem [#allocation6], %s208
          %211 = vsyncadd %s206, 0
          %s212 = sadd.s32 %s30, %s29
          %s213 = smul.addr %s212, 8
          %s214 = scalar_lea.hbm %s0, %s213
          %s216 = sshll.u32 %s214, 4
          %s217 = int_to_ptr.hbm [resolvable:$true] %s216
          %s218 = sshll.u32 %s209, 4
          %s219 = int_to_ptr.vmem [resolvable:$true] %s218
          %221 = dma.hbm_to_vmem [thread:$0]  %s217, 128, %s219, %s206
        $region20: #{tpu_custom_call.1} parent=15 // pred_fallthru
          _
        // Predicated region
        $region21: #{tpu_custom_call.1} parent=15 // pred_check
          %p222 = pneg %p91
        $region22: #{tpu_custom_call.1} parent=15 // pred_check_branch
          %224 = sbr.rel (%p222) target = $region24
        $region23: #{tpu_custom_call.1} parent=15 // pred_region
          %s225 = sand.u32 %s22, 1
          %s226 = scalar_lea.sflag [#allocation10], %s225
          %s227 = sand.u32 %s81, 1
          %s228 = smul.addr %s227, 8
          %s229 = scalar_lea.vmem [#allocation9], %s228
          %231 = vsyncadd %s226, 0
          %s232 = sadd.s32 %s31, %s29
          %s233 = smul.addr %s232, 8
          %s234 = scalar_lea.hbm %s1, %s233
          %s236 = sshll.u32 %s234, 4
          %s237 = int_to_ptr.hbm [resolvable:$true] %s236
          %s238 = sshll.u32 %s229, 4
          %s239 = int_to_ptr.vmem [resolvable:$true] %s238
          %241 = dma.hbm_to_vmem [thread:$0]  %s237, 128, %s239, %s226
        $region24: #{tpu_custom_call.1} parent=15 // pred_fallthru
          _
        // Predicated region
        $region25: #{tpu_custom_call.1} parent=15 // pred_check
          %p242 = pneg %p119
        $region26: #{tpu_custom_call.1} parent=15 // pred_check_branch
          %244 = sbr.rel (%p242) target = $region28
        $region27: #{tpu_custom_call.1} parent=15 // pred_region
          %s245 = sand.u32 %s22, 1
          %s246 = scalar_lea.sflag [#allocation10], %s245
          %s247 = sand.u32 %s109, 1
          %s248 = smul.addr %s247, 8
          %s249 = scalar_lea.vmem [#allocation11], %s248
          %251 = vsyncadd %s246, 0
          %s252 = sadd.s32 %s31, %s29
          %s253 = smul.addr %s252, 8
          %s254 = scalar_lea.hbm %s2, %s253
          %s256 = sshll.u32 %s254, 4
          %s257 = int_to_ptr.hbm [resolvable:$true] %s256
          %s258 = sshll.u32 %s249, 4
          %s259 = int_to_ptr.vmem [resolvable:$true] %s258
          %261 = dma.hbm_to_vmem [thread:$0]  %s257, 128, %s259, %s246
        $region28: #{tpu_custom_call.1} parent=15 // pred_fallthru
          _
        // Predicated region
        $region29: #{tpu_custom_call.1} parent=15 // pred_check
          %p262 = pneg %p149
        $region30: #{tpu_custom_call.1} parent=15 // pred_check_branch
          %264 = sbr.rel (%p262) target = $region32
        $region31: #{tpu_custom_call.1} parent=15 // pred_region
          %s265 = sand.u32 %s139, 1
          %s266 = scalar_lea.sflag [#allocation13], %s265
          %s267 = sand.u32 %s139, 1
          %s268 = smul.addr %s267, 8
          %s269 = scalar_lea.vmem [#allocation12], %s268
          %271 = vsyncadd %s266, 0
          %s272 = sadd.s32 %s31, %s30
          %s273 = sadd.s32 %s272, %s29
          %s274 = smul.addr %s273, 8
          %s275 = scalar_lea.hbm %s3, %s274
          %s277 = sshll.u32 %s275, 4
          %s278 = int_to_ptr.hbm [resolvable:$true] %s277
          %s279 = sshll.u32 %s269, 4
          %s280 = int_to_ptr.vmem [resolvable:$true] %s279
          %282 = dma.hbm_to_vmem [thread:$0]  %s278, 128, %s280, %s266
        $region32: #{tpu_custom_call.1} parent=15 // pred_fallthru
          _
      $region16: #{tpu_custom_call.1} parent=5 // pred_fallthru
        _
      %p283 = scmp.le.s32.totalorder 1, %s22
      %p284 = scmp.lt.s32.totalorder %s22, 3
      %p285 = pnand %p283, %p284
      %p286 = pneg %p285
      // Predicated region
      $region33: #{tpu_custom_call.1} parent=5 // pred_check
        _
      $region34: #{tpu_custom_call.1} parent=5 // pred_check_branch
        %288 = sbr.rel (%p285) target = $region36
      $region35: #{tpu_custom_call.1} parent=5 // pred_region
        %s289 = ssub.s32 %s22, 1
        %s290 = sand.u32 %s56, 1
        %s291 = scalar_lea.sflag [#allocation7], %s290
        %s292 = sand.u32 %s56, 1
        %s293 = smul.addr %s292, 8
        %s294 = scalar_lea.vmem [#allocation6], %s293
        // Predicated region
        $region37: #{tpu_custom_call.1} parent=35 // pred_check
          %p295 = pneg %p69
        $region38: #{tpu_custom_call.1} parent=35 // pred_check_branch
          %297 = sbr.rel (%p295) target = $region40
        $region39: #{tpu_custom_call.1} parent=35 // pred_region
          %299 = dma.done %s291, 128
        $region40: #{tpu_custom_call.1} parent=35 // pred_fallthru
          _
        %s300 = sand.u32 %s27, 1
        %s301 = scalar_lea.sflag [#allocation10], %s300
        %s302 = sand.u32 %s84, 1
        %s303 = smul.addr %s302, 8
        %s304 = scalar_lea.vmem [#allocation9], %s303
        // Predicated region
        $region41: #{tpu_custom_call.1} parent=35 // pred_check
          %p305 = pneg %p97
        $region42: #{tpu_custom_call.1} parent=35 // pred_check_branch
          %307 = sbr.rel (%p305) target = $region44
        $region43: #{tpu_custom_call.1} parent=35 // pred_region
          %309 = dma.done %s301, 128
        $region44: #{tpu_custom_call.1} parent=35 // pred_fallthru
          _
        %s310 = sand.u32 %s27, 1
        %s311 = scalar_lea.sflag [#allocation10], %s310
        %s312 = sand.u32 %s112, 1
        %s313 = smul.addr %s312, 8
        %s314 = scalar_lea.vmem [#allocation11], %s313
        // Predicated region
        $region45: #{tpu_custom_call.1} parent=35 // pred_check
          %p315 = pneg %p125
        $region46: #{tpu_custom_call.1} parent=35 // pred_check_branch
          %317 = sbr.rel (%p315) target = $region48
        $region47: #{tpu_custom_call.1} parent=35 // pred_region
          %319 = dma.done %s311, 128
        $region48: #{tpu_custom_call.1} parent=35 // pred_fallthru
          _
        %s320 = sand.u32 %s142, 1
        %s321 = scalar_lea.sflag [#allocation13], %s320
        %s322 = sand.u32 %s142, 1
        %s323 = smul.addr %s322, 8
        %s324 = scalar_lea.vmem [#allocation12], %s323
        // Predicated region
        $region49: #{tpu_custom_call.1} parent=35 // pred_check
          %p325 = pneg %p155
        $region50: #{tpu_custom_call.1} parent=35 // pred_check_branch
          %327 = sbr.rel (%p325) target = $region52
        $region51: #{tpu_custom_call.1} parent=35 // pred_region
          %329 = dma.done %s321, 128
        $region52: #{tpu_custom_call.1} parent=35 // pred_fallthru
          _
        %s330 = sand.u32 %s56, 1
        %s331 = scalar_lea.sflag [#allocation7], %s330
        %s332 = sand.u32 %s56, 1
        %s333 = smul.addr %s332, 8
        %s334 = scalar_lea.vmem [#allocation6], %s333
        %p335 = pneg %p69
        %p336 = pneg %p66
        %s337 = sand.u32 %s27, 1
        %s338 = scalar_lea.sflag [#allocation10], %s337
        %s339 = sand.u32 %s84, 1
        %s340 = smul.addr %s339, 8
        %s341 = scalar_lea.vmem [#allocation9], %s340
        %p342 = pneg %p97
        %p343 = pneg %p94
        %s344 = sand.u32 %s27, 1
        %s345 = scalar_lea.sflag [#allocation10], %s344
        %s346 = sand.u32 %s112, 1
        %s347 = smul.addr %s346, 8
        %s348 = scalar_lea.vmem [#allocation11], %s347
        %p349 = pneg %p125
        %p350 = pneg %p122
        %s351 = sand.u32 %s142, 1
        %s352 = scalar_lea.sflag [#allocation13], %s351
        %s353 = sand.u32 %s142, 1
        %s354 = smul.addr %s353, 8
        %s355 = scalar_lea.vmem [#allocation12], %s354
        %p356 = pneg %p155
        %p357 = pneg %p152
        %p358 = pneg %p183
        %p359 = pneg %p180
        %s360 = sand.u32 %s170, 1
        %s361 = scalar_lea.sflag [#allocation8], %s360
        %s362 = sand.u32 %s170, 1
        %s363 = smul.addr %s362, 8
        %s364 = scalar_lea.vmem [#allocation14], %s363
        %p365 = scmp.eq.s32.totalorder %s34, 0
        // Predicated region
        $region53: #{tpu_custom_call.1} parent=35 // pred_check
          %p366 = pneg %p365
        $region54: #{tpu_custom_call.1} parent=35 // pred_check_branch
          %368 = sbr.rel (%p366) target = $region56
        $region55: #{tpu_custom_call.1} parent=35 // pred_region
          %v369 = vld [vmem:[%s294] sm:$0xff]
          %v370 = vmul.f32 %v369, 0.17677669
          %372 = vrot.lane.b32.xlu0 %v370, 96
          %v373 = vpop.permute.xlu0 %372
          %375 = vrot.lane.b32.xlu0 %v370, 64
          %v376 = vpop.permute.xlu0 %375
          %378 = vrot.lane.b32.xlu0 %v370, 32
          %v379 = vpop.permute.xlu0 %378
          %v381 = vrot.slane %v376, 4
          %vm382 = vcmask 1047556
          %v383 = vsel %vm382, %v381, %v370
          %v384 = vrot.slane %v370, 4
          %v385 = vsel %vm382, %v376, %v384
          %v387 = vunpack.c.l.s4 1983009808
          %v388 = vunpack.c.0.s8 %v387
          %v389 = vperm.slane %v383, %v388
          %v391 = vunpack.c.l.s4 1983009808
          %v392 = vunpack.c.0.s8 %v391
          %v393 = vperm.slane %v385, %v392
          %v394 = vrot.slane %v379, 4
          %v395 = vsel %vm382, %v394, %v373
          %v396 = vrot.slane %v373, 4
          %v397 = vsel %vm382, %v379, %v396
          %v399 = vunpack.c.l.s4 1983009808
          %v400 = vunpack.c.0.s8 %v399
          %v401 = vperm.slane %v395, %v400
          %v403 = vunpack.c.l.s4 1983009808
          %v404 = vunpack.c.0.s8 %v403
          %v405 = vperm.slane %v397, %v404
          %v406 = vrot.slane %v401, 4
          %v407 = vsel %vm382, %v406, %v389
          %v408 = vrot.slane %v389, 4
          %v409 = vsel %vm382, %v401, %v408
          %v411 = vunpack.c.l.s4 1934713408
          %v412 = vunpack.c.0.s8 %v411
          %v413 = vperm.slane %v407, %v412
          %v415 = vunpack.c.l.s4 1934713408
          %v416 = vunpack.c.0.s8 %v415
          %v417 = vperm.slane %v409, %v416
          %v418 = vrot.slane %v405, 4
          %v419 = vsel %vm382, %v418, %v393
          %v420 = vrot.slane %v393, 4
          %v421 = vsel %vm382, %v405, %v420
          %v423 = vunpack.c.l.s4 1934713408
          %v424 = vunpack.c.0.s8 %v423
          %v425 = vperm.slane %v419, %v424
          %v427 = vunpack.c.l.s4 1934713408
          %v428 = vunpack.c.0.s8 %v427
          %v429 = vperm.slane %v421, %v428
          %v430 = vrot.slane %v413, 4
          %v431 = vsel %vm382, 0.0, %v430
          %v432 = vrot.slane %v417, 4
          %v433 = vsel %vm382, 0.0, %v432
          %v434 = vrot.slane %v425, 4
          %v435 = vsel %vm382, 0.0, %v434
          %v436 = vrot.slane %v429, 4
          %v437 = vsel %vm382, 0.0, %v436
          %v438 = vsel %vm382, %v432, %v413
          %v440 = vunpack.c.l.s4 1983009808
          %v441 = vunpack.c.0.s8 %v440
          %v442 = vperm.slane %v438, %v441
          %v443 = vrot.slane %v433, 4
          %v444 = vsel %vm382, %v443, %v431
          %v446 = vunpack.c.l.s4 1983009808
          %v447 = vunpack.c.0.s8 %v446
          %v448 = vperm.slane %v444, %v447
          %v449 = vsel %vm382, %v436, %v425
          %v451 = vunpack.c.l.s4 1983009808
          %v452 = vunpack.c.0.s8 %v451
          %v453 = vperm.slane %v449, %v452
          %v454 = vrot.slane %v437, 4
          %v455 = vsel %vm382, %v454, %v435
          %v457 = vunpack.c.l.s4 1983009808
          %v458 = vunpack.c.0.s8 %v457
          %v459 = vperm.slane %v455, %v458
          %v460 = vrot.slane %v448, 4
          %v461 = vsel %vm382, %v460, %v442
          %v462 = vrot.slane %v442, 4
          %v463 = vsel %vm382, %v448, %v462
          %v465 = vunpack.c.l.s4 1934713408
          %v466 = vunpack.c.0.s8 %v465
          %v467 = vperm.slane %v461, %v466
          %v469 = vunpack.c.l.s4 1934713408
          %v470 = vunpack.c.0.s8 %v469
          %v471 = vperm.slane %v463, %v470
          %v472 = vrot.slane %v459, 4
          %v473 = vsel %vm382, %v472, %v453
          %v474 = vrot.slane %v453, 4
          %v475 = vsel %vm382, %v459, %v474
          %v477 = vunpack.c.l.s4 1934713408
          %v478 = vunpack.c.0.s8 %v477
          %v479 = vperm.slane %v473, %v478
          %v481 = vunpack.c.l.s4 1934713408
          %v482 = vunpack.c.0.s8 %v481
          %v483 = vperm.slane %v475, %v482
          %v484 = vrot.slane %v479, 4
          %v485 = vsel %vm382, %v484, %v467
          %v486 = vrot.slane %v467, 4
          %v487 = vsel %vm382, %v479, %v486
          %v488 = vrot.slane %v483, 4
          %v489 = vsel %vm382, %v488, %v471
          %v490 = vrot.slane %v471, 4
          %v491 = vsel %vm382, %v483, %v490
          %vm492 = vcmask 261120
          %493 = vst.msk [vmem:[#allocation2] sm:$0xff] %vm492, %v485
          %494 = vst.msk [vmem:[#allocation2 + $0x8] sm:$0xff] %vm492, %v487
          %495 = vst.msk [vmem:[#allocation2 + $0x10] sm:$0xff] %vm492, %v489
          %496 = vst.msk [vmem:[#allocation2 + $0x18] sm:$0xff] %vm492, %v491
          %vm497 = vcmask 7168
          %498 = vst.msk [vmem:[#allocation3] sm:$0xff] %vm497, -inf
          %499 = vst.msk [vmem:[#allocation3 + $0x8] sm:$0xff] %vm497, -inf
          %500 = vst.msk [vmem:[#allocation3 + $0x10] sm:$0xff] %vm497, -inf
          %501 = vst.msk [vmem:[#allocation3 + $0x18] sm:$0xff] %vm497, -inf
          %502 = vst.msk [vmem:[#allocation4] sm:$0xff] %vm497, 0.0
          %503 = vst.msk [vmem:[#allocation4 + $0x8] sm:$0xff] %vm497, 0.0
          %504 = vst.msk [vmem:[#allocation4 + $0x10] sm:$0xff] %vm497, 0.0
          %505 = vst.msk [vmem:[#allocation4 + $0x18] sm:$0xff] %vm497, 0.0
          %506 = vst.msk [vmem:[#allocation5] sm:$0xff] %vm492, 0.0
          %507 = vst.msk [vmem:[#allocation5 + $0x8] sm:$0xff] %vm492, 0.0
          %508 = vst.msk [vmem:[#allocation5 + $0x10] sm:$0xff] %vm492, 0.0
          %509 = vst.msk [vmem:[#allocation5 + $0x18] sm:$0xff] %vm492, 0.0
        $region56: #{tpu_custom_call.1} parent=35 // pred_fallthru
          _
        %v510 = vld [vmem:[%s304] sm:$0xff]
        %512 = vrot.lane.b32.xlu0 %v510, 96
        %v513 = vpop.permute.xlu0 %512
        %515 = vrot.lane.b32.xlu0 %v510, 64
        %v516 = vpop.permute.xlu0 %515
        %518 = vrot.lane.b32.xlu0 %v510, 32
        %v519 = vpop.permute.xlu0 %518
        %v521 = vrot.slane %v516, 4
        %vm522 = vcmask 1047556
        %v523 = vsel %vm522, %v521, %v510
        %v524 = vrot.slane %v510, 4
        %v525 = vsel %vm522, %v516, %v524
        %v527 = vunpack.c.l.s4 1983009808
        %v528 = vunpack.c.0.s8 %v527
        %v529 = vperm.slane %v523, %v528
        %v531 = vunpack.c.l.s4 1983009808
        %v532 = vunpack.c.0.s8 %v531
        %v533 = vperm.slane %v525, %v532
        %v534 = vrot.slane %v519, 4
        %v535 = vsel %vm522, %v534, %v513
        %v536 = vrot.slane %v513, 4
        %v537 = vsel %vm522, %v519, %v536
        %v539 = vunpack.c.l.s4 1983009808
        %v540 = vunpack.c.0.s8 %v539
        %v541 = vperm.slane %v535, %v540
        %v543 = vunpack.c.l.s4 1983009808
        %v544 = vunpack.c.0.s8 %v543
        %v545 = vperm.slane %v537, %v544
        %v546 = vrot.slane %v541, 4
        %v547 = vsel %vm522, %v546, %v529
        %v548 = vrot.slane %v529, 4
        %v549 = vsel %vm522, %v541, %v548
        %v551 = vunpack.c.l.s4 1934713408
        %v552 = vunpack.c.0.s8 %v551
        %v553 = vperm.slane %v547, %v552
        %v555 = vunpack.c.l.s4 1934713408
        %v556 = vunpack.c.0.s8 %v555
        %v557 = vperm.slane %v549, %v556
        %v558 = vrot.slane %v545, 4
        %v559 = vsel %vm522, %v558, %v533
        %v560 = vrot.slane %v533, 4
        %v561 = vsel %vm522, %v545, %v560
        %v563 = vunpack.c.l.s4 1934713408
        %v564 = vunpack.c.0.s8 %v563
        %v565 = vperm.slane %v559, %v564
        %v567 = vunpack.c.l.s4 1934713408
        %v568 = vunpack.c.0.s8 %v567
        %v569 = vperm.slane %v561, %v568
        %v570 = vrot.slane %v553, 4
        %v571 = vsel %vm522, 0.0, %v570
        %v572 = vrot.slane %v557, 4
        %v573 = vsel %vm522, 0.0, %v572
        %v574 = vrot.slane %v565, 4
        %v575 = vsel %vm522, 0.0, %v574
        %v576 = vrot.slane %v569, 4
        %v577 = vsel %vm522, 0.0, %v576
        %v578 = vsel %vm522, %v572, %v553
        %v580 = vunpack.c.l.s4 1983009808
        %v581 = vunpack.c.0.s8 %v580
        %v582 = vperm.slane %v578, %v581
        %v583 = vrot.slane %v573, 4
        %v584 = vsel %vm522, %v583, %v571
        %v586 = vunpack.c.l.s4 1983009808
        %v587 = vunpack.c.0.s8 %v586
        %v588 = vperm.slane %v584, %v587
        %v589 = vsel %vm522, %v576, %v565
        %v591 = vunpack.c.l.s4 1983009808
        %v592 = vunpack.c.0.s8 %v591
        %v593 = vperm.slane %v589, %v592
        %v594 = vrot.slane %v577, 4
        %v595 = vsel %vm522, %v594, %v575
        %v597 = vunpack.c.l.s4 1983009808
        %v598 = vunpack.c.0.s8 %v597
        %v599 = vperm.slane %v595, %v598
        %v600 = vrot.slane %v588, 4
        %v601 = vsel %vm522, %v600, %v582
        %v602 = vrot.slane %v582, 4
        %v603 = vsel %vm522, %v588, %v602
        %v605 = vunpack.c.l.s4 1934713408
        %v606 = vunpack.c.0.s8 %v605
        %v607 = vperm.slane %v601, %v606
        %v609 = vunpack.c.l.s4 1934713408
        %v610 = vunpack.c.0.s8 %v609
        %v611 = vperm.slane %v603, %v610
        %v612 = vrot.slane %v599, 4
        %v613 = vsel %vm522, %v612, %v593
        %v614 = vrot.slane %v593, 4
        %v615 = vsel %vm522, %v599, %v614
        %v617 = vunpack.c.l.s4 1934713408
        %v618 = vunpack.c.0.s8 %v617
        %v619 = vperm.slane %v613, %v618
        %v621 = vunpack.c.l.s4 1934713408
        %v622 = vunpack.c.0.s8 %v621
        %v623 = vperm.slane %v615, %v622
        %v624 = vrot.slane %v619, 4
        %v625 = vsel %vm522, %v624, %v607
        %v626 = vrot.slane %v607, 4
        %v627 = vsel %vm522, %v619, %v626
        %v628 = vrot.slane %v623, 4
        %v629 = vsel %vm522, %v628, %v611
        %v630 = vrot.slane %v611, 4
        %v631 = vsel %vm522, %v623, %v630
        %v632 = vld [vmem:[%s314] sm:$0xff]
        %634 = vrot.lane.b32.xlu0 %v632, 96
        %v635 = vpop.permute.xlu0 %634
        %637 = vrot.lane.b32.xlu0 %v632, 64
        %v638 = vpop.permute.xlu0 %637
        %640 = vrot.lane.b32.xlu0 %v632, 32
        %v641 = vpop.permute.xlu0 %640
        %v643 = vrot.slane %v638, 4
        %v644 = vsel %vm522, %v643, %v632
        %v645 = vrot.slane %v632, 4
        %v646 = vsel %vm522, %v638, %v645
        %v648 = vunpack.c.l.s4 1983009808
        %v649 = vunpack.c.0.s8 %v648
        %v650 = vperm.slane %v644, %v649
        %v652 = vunpack.c.l.s4 1983009808
        %v653 = vunpack.c.0.s8 %v652
        %v654 = vperm.slane %v646, %v653
        %v655 = vrot.slane %v641, 4
        %v656 = vsel %vm522, %v655, %v635
        %v657 = vrot.slane %v635, 4
        %v658 = vsel %vm522, %v641, %v657
        %v660 = vunpack.c.l.s4 1983009808
        %v661 = vunpack.c.0.s8 %v660
        %v662 = vperm.slane %v656, %v661
        %v664 = vunpack.c.l.s4 1983009808
        %v665 = vunpack.c.0.s8 %v664
        %v666 = vperm.slane %v658, %v665
        %v667 = vrot.slane %v662, 4
        %v668 = vsel %vm522, %v667, %v650
        %v669 = vrot.slane %v650, 4
        %v670 = vsel %vm522, %v662, %v669
        %v672 = vunpack.c.l.s4 1934713408
        %v673 = vunpack.c.0.s8 %v672
        %v674 = vperm.slane %v668, %v673
        %v676 = vunpack.c.l.s4 1934713408
        %v677 = vunpack.c.0.s8 %v676
        %v678 = vperm.slane %v670, %v677
        %v679 = vrot.slane %v666, 4
        %v680 = vsel %vm522, %v679, %v654
        %v681 = vrot.slane %v654, 4
        %v682 = vsel %vm522, %v666, %v681
        %v684 = vunpack.c.l.s4 1934713408
        %v685 = vunpack.c.0.s8 %v684
        %v686 = vperm.slane %v680, %v685
        %v688 = vunpack.c.l.s4 1934713408
        %v689 = vunpack.c.0.s8 %v688
        %v690 = vperm.slane %v682, %v689
        %v691 = vrot.slane %v674, 4
        %v692 = vsel %vm522, 0.0, %v691
        %v693 = vrot.slane %v678, 4
        %v694 = vsel %vm522, 0.0, %v693
        %v695 = vrot.slane %v686, 4
        %v696 = vsel %vm522, 0.0, %v695
        %v697 = vrot.slane %v690, 4
        %v698 = vsel %vm522, 0.0, %v697
        %v699 = vsel %vm522, %v693, %v674
        %v701 = vunpack.c.l.s4 1983009808
        %v702 = vunpack.c.0.s8 %v701
        %v703 = vperm.slane %v699, %v702
        %v704 = vrot.slane %v694, 4
        %v705 = vsel %vm522, %v704, %v692
        %v707 = vunpack.c.l.s4 1983009808
        %v708 = vunpack.c.0.s8 %v707
        %v709 = vperm.slane %v705, %v708
        %v710 = vsel %vm522, %v697, %v686
        %v712 = vunpack.c.l.s4 1983009808
        %v713 = vunpack.c.0.s8 %v712
        %v714 = vperm.slane %v710, %v713
        %v715 = vrot.slane %v698, 4
        %v716 = vsel %vm522, %v715, %v696
        %v718 = vunpack.c.l.s4 1983009808
        %v719 = vunpack.c.0.s8 %v718
        %v720 = vperm.slane %v716, %v719
        %v721 = vrot.slane %v709, 4
        %v722 = vsel %vm522, %v721, %v703
        %v723 = vrot.slane %v703, 4
        %v724 = vsel %vm522, %v709, %v723
        %v726 = vunpack.c.l.s4 1934713408
        %v727 = vunpack.c.0.s8 %v726
        %v728 = vperm.slane %v722, %v727
        %v730 = vunpack.c.l.s4 1934713408
        %v731 = vunpack.c.0.s8 %v730
        %v732 = vperm.slane %v724, %v731
        %v733 = vrot.slane %v720, 4
        %v734 = vsel %vm522, %v733, %v714
        %v735 = vrot.slane %v714, 4
        %v736 = vsel %vm522, %v720, %v735
        %v738 = vunpack.c.l.s4 1934713408
        %v739 = vunpack.c.0.s8 %v738
        %v740 = vperm.slane %v734, %v739
        %v742 = vunpack.c.l.s4 1934713408
        %v743 = vunpack.c.0.s8 %v742
        %v744 = vperm.slane %v736, %v743
        %v745 = vrot.slane %v740, 4
        %v746 = vsel %vm522, %v745, %v728
        %v747 = vrot.slane %v728, 4
        %v748 = vsel %vm522, %v740, %v747
        %v749 = vrot.slane %v744, 4
        %v750 = vsel %vm522, %v749, %v732
        %v751 = vrot.slane %v732, 4
        %v752 = vsel %vm522, %v744, %v751
        %v753 = vld [vmem:[#allocation2] sm:$0xff]
        %v754 = vld [vmem:[#allocation2 + $0x8] sm:$0xff]
        %v755 = vld [vmem:[#allocation2 + $0x10] sm:$0xff]
        %v756 = vld [vmem:[#allocation2 + $0x18] sm:$0xff]
        %v757 = vld [vmem:[%s324] sm:$0xff]
        %vm758 = vcmask 261120
        %v760 = vsel %vm758, %v753, 0
        %v763 = vsel %vm758, %v625, 0
        %765 = vmatpush.xpose.msra.mxu0 0.0
        %766 = vmatpush.xpose.msra.mxu0 0.0
        %767 = vmatpush.xpose.msra.mxu0 0.0
        %768 = vmatpush.xpose.msra.mxu0 0.0
        %769 = vmatpush.xpose.msra.mxu0 0.0
        %770 = vmatpush.xpose.msra.mxu0 0.0
        %771 = vmatpush.xpose.msra.mxu0 0.0
        %772 = vmatpush.xpose.msra.mxu0 0.0
        %773 = vmatpush.xpose.msra.mxu0 0.0
        %774 = vmatpush.xpose.msra.mxu0 0.0
        %775 = vmatpush.xpose.msra.mxu0 0.0
        %776 = vmatpush.xpose.msra.mxu0 0.0
        %777 = vmatpush.xpose.msra.mxu0 0.0
        %778 = vmatpush.xpose.msra.mxu0 0.0
        %779 = vmatpush.xpose.msra.mxu0 0.0
        %780 = vmatpush.xpose.msra.mxu0 %v763
        %781 = vmatmul.f32.gmra.mxu0 %v760
        %v782 = vpop.f32.mrf.mxu0
        %v783 = vadd.f32 %v757, %v782
        %784 = vdwg.mxu0
        %v786 = vsel %vm758, %v754, 0
        %v789 = vsel %vm758, %v627, 0
        %791 = vmatpush.xpose.msra.mxu0 0.0
        %792 = vmatpush.xpose.msra.mxu0 0.0
        %793 = vmatpush.xpose.msra.mxu0 0.0
        %794 = vmatpush.xpose.msra.mxu0 0.0
        %795 = vmatpush.xpose.msra.mxu0 0.0
        %796 = vmatpush.xpose.msra.mxu0 0.0
        %797 = vmatpush.xpose.msra.mxu0 0.0
        %798 = vmatpush.xpose.msra.mxu0 0.0
        %799 = vmatpush.xpose.msra.mxu0 0.0
        %800 = vmatpush.xpose.msra.mxu0 0.0
        %801 = vmatpush.xpose.msra.mxu0 0.0
        %802 = vmatpush.xpose.msra.mxu0 0.0
        %803 = vmatpush.xpose.msra.mxu0 0.0
        %804 = vmatpush.xpose.msra.mxu0 0.0
        %805 = vmatpush.xpose.msra.mxu0 0.0
        %806 = vmatpush.xpose.msra.mxu0 %v789
        %807 = vmatmul.f32.gmra.mxu0 %v786
        %v808 = vpop.f32.mrf.mxu0
        %v809 = vadd.f32 %v757, %v808
        %810 = vdwg.mxu0
        %v812 = vsel %vm758, %v755, 0
        %v815 = vsel %vm758, %v629, 0
        %817 = vmatpush.xpose.msra.mxu0 0.0
        %818 = vmatpush.xpose.msra.mxu0 0.0
        %819 = vmatpush.xpose.msra.mxu0 0.0
        %820 = vmatpush.xpose.msra.mxu0 0.0
        %821 = vmatpush.xpose.msra.mxu0 0.0
        %822 = vmatpush.xpose.msra.mxu0 0.0
        %823 = vmatpush.xpose.msra.mxu0 0.0
        %824 = vmatpush.xpose.msra.mxu0 0.0
        %825 = vmatpush.xpose.msra.mxu0 0.0
        %826 = vmatpush.xpose.msra.mxu0 0.0
        %827 = vmatpush.xpose.msra.mxu0 0.0
        %828 = vmatpush.xpose.msra.mxu0 0.0
        %829 = vmatpush.xpose.msra.mxu0 0.0
        %830 = vmatpush.xpose.msra.mxu0 0.0
        %831 = vmatpush.xpose.msra.mxu0 0.0
        %832 = vmatpush.xpose.msra.mxu0 %v815
        %833 = vmatmul.f32.gmra.mxu0 %v812
        %v834 = vpop.f32.mrf.mxu0
        %v835 = vadd.f32 %v757, %v834
        %836 = vdwg.mxu0
        %v838 = vsel %vm758, %v756, 0
        %v841 = vsel %vm758, %v631, 0
        %843 = vmatpush.xpose.msra.mxu0 0.0
        %844 = vmatpush.xpose.msra.mxu0 0.0
        %845 = vmatpush.xpose.msra.mxu0 0.0
        %846 = vmatpush.xpose.msra.mxu0 0.0
        %847 = vmatpush.xpose.msra.mxu0 0.0
        %848 = vmatpush.xpose.msra.mxu0 0.0
        %849 = vmatpush.xpose.msra.mxu0 0.0
        %850 = vmatpush.xpose.msra.mxu0 0.0
        %851 = vmatpush.xpose.msra.mxu0 0.0
        %852 = vmatpush.xpose.msra.mxu0 0.0
        %853 = vmatpush.xpose.msra.mxu0 0.0
        %854 = vmatpush.xpose.msra.mxu0 0.0
        %855 = vmatpush.xpose.msra.mxu0 0.0
        %856 = vmatpush.xpose.msra.mxu0 0.0
        %857 = vmatpush.xpose.msra.mxu0 0.0
        %858 = vmatpush.xpose.msra.mxu0 %v841
        %859 = vmatmul.f32.gmra.mxu0 %v838
        %v860 = vpop.f32.mrf.mxu0
        %v861 = vadd.f32 %v757, %v860
        %862 = vdwg.mxu0
        %v863 = vld [vmem:[#allocation3] sm:$0xff]
        %v864 = vld [vmem:[#allocation3 + $0x8] sm:$0xff]
        %v865 = vld [vmem:[#allocation3 + $0x10] sm:$0xff]
        %v866 = vld [vmem:[#allocation3 + $0x18] sm:$0xff]
        %v867 = vld [vmem:[#allocation4] sm:$0xff]
        %v868 = vld [vmem:[#allocation4 + $0x8] sm:$0xff]
        %v869 = vld [vmem:[#allocation4 + $0x10] sm:$0xff]
        %v870 = vld [vmem:[#allocation4 + $0x18] sm:$0xff]
        %vm871 = vcmask 64512
        %v872 = vsel %vm871, %v783, -inf
        %873 = vmax.xlane.f32.xlu0 %v872
        %v874 = vpop.xlane.xlu0 %873
        %v875 = vsel %vm871, %v809, -inf
        %876 = vmax.xlane.f32.xlu0 %v875
        %v877 = vpop.xlane.xlu0 %876
        %v878 = vsel %vm871, %v835, -inf
        %879 = vmax.xlane.f32.xlu0 %v878
        %v880 = vpop.xlane.xlu0 %879
        %v881 = vsel %vm871, %v861, -inf
        %882 = vmax.xlane.f32.xlu0 %v881
        %v883 = vpop.xlane.xlu0 %882
        %v884 = vmax.f32 %v863, %v874
        %v885 = vmax.f32 %v864, %v877
        %v886 = vmax.f32 %v865, %v880
        %v887 = vmax.f32 %v866, %v883
        %v888 = vsub.f32 %v863, %v884
        %v889 = vsub.f32 %v864, %v885
        %v890 = vsub.f32 %v865, %v886
        %v891 = vsub.f32 %v866, %v887
        %v892 = vmul.f32 %v888, 1.442695
        %v893 = vpow.pop %v892
        %v894 = vmul.f32 %v889, 1.442695
        %v895 = vpow.pop %v894
        %v896 = vmul.f32 %v890, 1.442695
        %v897 = vpow.pop %v896
        %v898 = vmul.f32 %v891, 1.442695
        %v899 = vpow.pop %v898
        %901 = vset.pattern.permute.xlu0 0
        %902 = vperm.xlu0 %901, %v884
        %v903 = vpop.permute.xlu0 %902
        %906 = vset.pattern.permute.xlu0 0
        %907 = vperm.xlu0 %906, %v885
        %v908 = vpop.permute.xlu0 %907
        %911 = vset.pattern.permute.xlu0 0
        %912 = vperm.xlu0 %911, %v886
        %v913 = vpop.permute.xlu0 %912
        %916 = vset.pattern.permute.xlu0 0
        %917 = vperm.xlu0 %916, %v887
        %v918 = vpop.permute.xlu0 %917
        %v920 = vsub.f32 %v783, %v903
        %v921 = vsub.f32 %v809, %v908
        %v922 = vsub.f32 %v835, %v913
        %v923 = vsub.f32 %v861, %v918
        %v924 = vmul.f32 %v920, 1.442695
        %v925 = vpow.pop %v924
        %v926 = vmul.f32 %v921, 1.442695
        %v927 = vpow.pop %v926
        %v928 = vmul.f32 %v922, 1.442695
        %v929 = vpow.pop %v928
        %v930 = vmul.f32 %v923, 1.442695
        %v931 = vpow.pop %v930
        %v932 = vmul.f32 %v893, %v867
        %v933 = vmul.f32 %v895, %v868
        %v934 = vmul.f32 %v897, %v869
        %v935 = vmul.f32 %v899, %v870
        %v936 = vsel %vm871, %v925, 0.0
        %937 = vadd.xlane.f32.xlu0 %v936
        %v938 = vpop.xlane.xlu0 %937
        %v939 = vsel %vm871, %v927, 0.0
        %940 = vadd.xlane.f32.xlu0 %v939
        %v941 = vpop.xlane.xlu0 %940
        %v942 = vsel %vm871, %v929, 0.0
        %943 = vadd.xlane.f32.xlu0 %v942
        %v944 = vpop.xlane.xlu0 %943
        %v945 = vsel %vm871, %v931, 0.0
        %946 = vadd.xlane.f32.xlu0 %v945
        %v947 = vpop.xlane.xlu0 %946
        %v948 = vadd.f32 %v932, %v938
        %v949 = vadd.f32 %v933, %v941
        %v950 = vadd.f32 %v934, %v944
        %v951 = vadd.f32 %v935, %v947
        %vm952 = vcmask 7168
        %953 = vst.msk [vmem:[#allocation4] sm:$0xff] %vm952, %v948
        %954 = vst.msk [vmem:[#allocation4 + $0x8] sm:$0xff] %vm952, %v949
        %955 = vst.msk [vmem:[#allocation4 + $0x10] sm:$0xff] %vm952, %v950
        %956 = vst.msk [vmem:[#allocation4 + $0x18] sm:$0xff] %vm952, %v951
        %957 = vst.msk [vmem:[#allocation3] sm:$0xff] %vm952, %v884
        %958 = vst.msk [vmem:[#allocation3 + $0x8] sm:$0xff] %vm952, %v885
        %959 = vst.msk [vmem:[#allocation3 + $0x10] sm:$0xff] %vm952, %v886
        %960 = vst.msk [vmem:[#allocation3 + $0x18] sm:$0xff] %vm952, %v887
        %v962 = vsel %vm871, %v925, 0
        %964 = vmatpush.msra.mxu0 0.0
        %965 = vmatpush.msra.mxu0 0.0
        %966 = vmatpush.msra.mxu0 0.0
        %967 = vmatpush.msra.mxu0 0.0
        %968 = vmatpush.msra.mxu0 0.0
        %969 = vmatpush.msra.mxu0 0.0
        %970 = vmatpush.msra.mxu0 0.0
        %971 = vmatpush.msra.mxu0 0.0
        %972 = vmatpush.msra.mxu0 0.0
        %973 = vmatpush.msra.mxu0 0.0
        %974 = vmatpush.msra.mxu0 0.0
        %975 = vmatpush.msra.mxu0 0.0
        %976 = vmatpush.msra.mxu0 0.0
        %977 = vmatpush.msra.mxu0 0.0
        %978 = vmatpush.msra.mxu0 0.0
        %979 = vmatpush.msra.mxu0 %v746
        %980 = vmatmul.f32.gmra.mxu0 %v962
        %v981 = vpop.f32.mrf.mxu0
        %v982 = vadd.f32 0.0, %v981
        %983 = vdwg.mxu0
        %v985 = vsel %vm871, %v927, 0
        %987 = vmatpush.msra.mxu0 0.0
        %988 = vmatpush.msra.mxu0 0.0
        %989 = vmatpush.msra.mxu0 0.0
        %990 = vmatpush.msra.mxu0 0.0
        %991 = vmatpush.msra.mxu0 0.0
        %992 = vmatpush.msra.mxu0 0.0
        %993 = vmatpush.msra.mxu0 0.0
        %994 = vmatpush.msra.mxu0 0.0
        %995 = vmatpush.msra.mxu0 0.0
        %996 = vmatpush.msra.mxu0 0.0
        %997 = vmatpush.msra.mxu0 0.0
        %998 = vmatpush.msra.mxu0 0.0
        %999 = vmatpush.msra.mxu0 0.0
        %1000 = vmatpush.msra.mxu0 0.0
        %1001 = vmatpush.msra.mxu0 0.0
        %1002 = vmatpush.msra.mxu0 %v748
        %1003 = vmatmul.f32.gmra.mxu0 %v985
        %v1004 = vpop.f32.mrf.mxu0
        %v1005 = vadd.f32 0.0, %v1004
        %1006 = vdwg.mxu0
        %v1008 = vsel %vm871, %v929, 0
        %1010 = vmatpush.msra.mxu0 0.0
        %1011 = vmatpush.msra.mxu0 0.0
        %1012 = vmatpush.msra.mxu0 0.0
        %1013 = vmatpush.msra.mxu0 0.0
        %1014 = vmatpush.msra.mxu0 0.0
        %1015 = vmatpush.msra.mxu0 0.0
        %1016 = vmatpush.msra.mxu0 0.0
        %1017 = vmatpush.msra.mxu0 0.0
        %1018 = vmatpush.msra.mxu0 0.0
        %1019 = vmatpush.msra.mxu0 0.0
        %1020 = vmatpush.msra.mxu0 0.0
        %1021 = vmatpush.msra.mxu0 0.0
        %1022 = vmatpush.msra.mxu0 0.0
        %1023 = vmatpush.msra.mxu0 0.0
        %1024 = vmatpush.msra.mxu0 0.0
        %1025 = vmatpush.msra.mxu0 %v750
        %1026 = vmatmul.f32.gmra.mxu0 %v1008
        %v1027 = vpop.f32.mrf.mxu0
        %v1028 = vadd.f32 0.0, %v1027
        %1029 = vdwg.mxu0
        %v1031 = vsel %vm871, %v931, 0
        %1033 = vmatpush.msra.mxu0 0.0
        %1034 = vmatpush.msra.mxu0 0.0
        %1035 = vmatpush.msra.mxu0 0.0
        %1036 = vmatpush.msra.mxu0 0.0
        %1037 = vmatpush.msra.mxu0 0.0
        %1038 = vmatpush.msra.mxu0 0.0
        %1039 = vmatpush.msra.mxu0 0.0
        %1040 = vmatpush.msra.mxu0 0.0
        %1041 = vmatpush.msra.mxu0 0.0
        %1042 = vmatpush.msra.mxu0 0.0
        %1043 = vmatpush.msra.mxu0 0.0
        %1044 = vmatpush.msra.mxu0 0.0
        %1045 = vmatpush.msra.mxu0 0.0
        %1046 = vmatpush.msra.mxu0 0.0
        %1047 = vmatpush.msra.mxu0 0.0
        %1048 = vmatpush.msra.mxu0 %v752
        %1049 = vmatmul.f32.gmra.mxu0 %v1031
        %v1050 = vpop.f32.mrf.mxu0
        %v1051 = vadd.f32 0.0, %v1050
        %1052 = vdwg.mxu0
        %v1053 = vld [vmem:[#allocation5] sm:$0xff]
        %v1054 = vld [vmem:[#allocation5 + $0x8] sm:$0xff]
        %v1055 = vld [vmem:[#allocation5 + $0x10] sm:$0xff]
        %v1056 = vld [vmem:[#allocation5 + $0x18] sm:$0xff]
        %1058 = vset.pattern.permute.xlu0 0
        %1059 = vperm.xlu0 %1058, %v893
        %v1060 = vpop.permute.xlu0 %1059
        %1063 = vset.pattern.permute.xlu0 0
        %1064 = vperm.xlu0 %1063, %v895
        %v1065 = vpop.permute.xlu0 %1064
        %1068 = vset.pattern.permute.xlu0 0
        %1069 = vperm.xlu0 %1068, %v897
        %v1070 = vpop.permute.xlu0 %1069
        %1073 = vset.pattern.permute.xlu0 0
        %1074 = vperm.xlu0 %1073, %v899
        %v1075 = vpop.permute.xlu0 %1074
        %v1077 = vmul.f32 %v1060, %v1053
        %v1078 = vmul.f32 %v1065, %v1054
        %v1079 = vmul.f32 %v1070, %v1055
        %v1080 = vmul.f32 %v1075, %v1056
        %v1081 = vadd.f32 %v1077, %v982
        %v1082 = vadd.f32 %v1078, %v1005
        %v1083 = vadd.f32 %v1079, %v1028
        %v1084 = vadd.f32 %v1080, %v1051
        %1085 = vst.msk [vmem:[#allocation5] sm:$0xff] %vm758, %v1081
        %1086 = vst.msk [vmem:[#allocation5 + $0x8] sm:$0xff] %vm758, %v1082
        %1087 = vst.msk [vmem:[#allocation5 + $0x10] sm:$0xff] %vm758, %v1083
        %1088 = vst.msk [vmem:[#allocation5 + $0x18] sm:$0xff] %vm758, %v1084
        // Predicated region
        $region57: #{tpu_custom_call.1} parent=35 // pred_check
          %p1089 = pneg %p365
        $region58: #{tpu_custom_call.1} parent=35 // pred_check_branch
          %1091 = sbr.rel (%p1089) target = $region60
        $region59: #{tpu_custom_call.1} parent=35 // pred_region
          %v1092 = vld [vmem:[#allocation4] sm:$0xff]
          %v1093 = vld [vmem:[#allocation4 + $0x8] sm:$0xff]
          %v1094 = vld [vmem:[#allocation4 + $0x10] sm:$0xff]
          %v1095 = vld [vmem:[#allocation4 + $0x18] sm:$0xff]
          %v1096 = vrcp.pop %v1092
          %v1097 = vmul.f32 %v1092, %v1096
          %v1098 = vsub.f32 1.0, %v1097
          %v1099 = vmul.f32 %v1096, %v1098
          %v1100 = vadd.f32 %v1096, %v1099
          %vm1101 = vweird.f32 %v1092
          %vm1102 = vweird.f32 %v1096
          %vm1103 = vmor %vm1101, %vm1102
          %v1104 = vsel %vm1103, %v1096, %v1100
          %v1105 = vand.u32 2147483647, %v1092
          %vm1106 = vcmp.eq.f32.partialorder %v1105, 8.507059e+37
          %v1107 = vand.u32 %v1092, 2147483648
          %v1108 = vor.u32 1.1754944e-38, %v1107
          %v1109 = vsel %vm1106, %v1108, %v1104
          %v1110 = vrcp.pop %v1093
          %v1111 = vmul.f32 %v1093, %v1110
          %v1112 = vsub.f32 1.0, %v1111
          %v1113 = vmul.f32 %v1110, %v1112
          %v1114 = vadd.f32 %v1110, %v1113
          %vm1115 = vweird.f32 %v1093
          %vm1116 = vweird.f32 %v1110
          %vm1117 = vmor %vm1115, %vm1116
          %v1118 = vsel %vm1117, %v1110, %v1114
          %v1119 = vand.u32 2147483647, %v1093
          %vm1120 = vcmp.eq.f32.partialorder %v1119, 8.507059e+37
          %v1121 = vand.u32 %v1093, 2147483648
          %v1122 = vor.u32 1.1754944e-38, %v1121
          %v1123 = vsel %vm1120, %v1122, %v1118
          %v1124 = vrcp.pop %v1094
          %v1125 = vmul.f32 %v1094, %v1124
          %v1126 = vsub.f32 1.0, %v1125
          %v1127 = vmul.f32 %v1124, %v1126
          %v1128 = vadd.f32 %v1124, %v1127
          %vm1129 = vweird.f32 %v1094
          %vm1130 = vweird.f32 %v1124
          %vm1131 = vmor %vm1129, %vm1130
          %v1132 = vsel %vm1131, %v1124, %v1128
          %v1133 = vand.u32 2147483647, %v1094
          %vm1134 = vcmp.eq.f32.partialorder %v1133, 8.507059e+37
          %v1135 = vand.u32 %v1094, 2147483648
          %v1136 = vor.u32 1.1754944e-38, %v1135
          %v1137 = vsel %vm1134, %v1136, %v1132
          %v1138 = vrcp.pop %v1095
          %v1139 = vmul.f32 %v1095, %v1138
          %v1140 = vsub.f32 1.0, %v1139
          %v1141 = vmul.f32 %v1138, %v1140
          %v1142 = vadd.f32 %v1138, %v1141
          %vm1143 = vweird.f32 %v1095
          %vm1144 = vweird.f32 %v1138
          %vm1145 = vmor %vm1143, %vm1144
          %v1146 = vsel %vm1145, %v1138, %v1142
          %v1147 = vand.u32 2147483647, %v1095
          %vm1148 = vcmp.eq.f32.partialorder %v1147, 8.507059e+37
          %v1149 = vand.u32 %v1095, 2147483648
          %v1150 = vor.u32 1.1754944e-38, %v1149
          %v1151 = vsel %vm1148, %v1150, %v1146
          %v1152 = vld [vmem:[#allocation5] sm:$0xff]
          %v1153 = vld [vmem:[#allocation5 + $0x8] sm:$0xff]
          %v1154 = vld [vmem:[#allocation5 + $0x10] sm:$0xff]
          %v1155 = vld [vmem:[#allocation5 + $0x18] sm:$0xff]
          %1157 = vset.pattern.permute.xlu0 0
          %1158 = vperm.xlu0 %1157, %v1109
          %v1159 = vpop.permute.xlu0 %1158
          %1162 = vset.pattern.permute.xlu0 0
          %1163 = vperm.xlu0 %1162, %v1123
          %v1164 = vpop.permute.xlu0 %1163
          %1167 = vset.pattern.permute.xlu0 0
          %1168 = vperm.xlu0 %1167, %v1137
          %v1169 = vpop.permute.xlu0 %1168
          %1172 = vset.pattern.permute.xlu0 0
          %1173 = vperm.xlu0 %1172, %v1151
          %v1174 = vpop.permute.xlu0 %1173
          %v1176 = vmul.f32 %v1152, %v1159
          %v1177 = vmul.f32 %v1153, %v1164
          %v1178 = vmul.f32 %v1154, %v1169
          %v1179 = vmul.f32 %v1155, %v1174
          %v1180 = vrot.slane %v1178, 4
          %v1181 = vsel %vm522, %v1180, %v1176
          %v1182 = vrot.slane %v1176, 4
          %v1183 = vsel %vm522, %v1178, %v1182
          %v1185 = vunpack.c.l.s4 1983009808
          %v1186 = vunpack.c.0.s8 %v1185
          %v1187 = vperm.slane %v1181, %v1186
          %v1189 = vunpack.c.l.s4 1983009808
          %v1190 = vunpack.c.0.s8 %v1189
          %v1191 = vperm.slane %v1183, %v1190
          %v1192 = vrot.slane %v1179, 4
          %v1193 = vsel %vm522, %v1192, %v1177
          %v1194 = vrot.slane %v1177, 4
          %v1195 = vsel %vm522, %v1179, %v1194
          %v1197 = vunpack.c.l.s4 1983009808
          %v1198 = vunpack.c.0.s8 %v1197
          %v1199 = vperm.slane %v1193, %v1198
          %v1201 = vunpack.c.l.s4 1983009808
          %v1202 = vunpack.c.0.s8 %v1201
          %v1203 = vperm.slane %v1195, %v1202
          %v1204 = vrot.slane %v1199, 4
          %v1205 = vsel %vm522, %v1204, %v1187
          %v1206 = vrot.slane %v1187, 4
          %v1207 = vsel %vm522, %v1199, %v1206
          %v1209 = vunpack.c.l.s4 1934713408
          %v1210 = vunpack.c.0.s8 %v1209
          %v1211 = vperm.slane %v1205, %v1210
          %v1213 = vunpack.c.l.s4 1934713408
          %v1214 = vunpack.c.0.s8 %v1213
          %v1215 = vperm.slane %v1207, %v1214
          %v1216 = vrot.slane %v1203, 4
          %v1217 = vsel %vm522, %v1216, %v1191
          %v1218 = vrot.slane %v1191, 4
          %v1219 = vsel %vm522, %v1203, %v1218
          %v1221 = vunpack.c.l.s4 1934713408
          %v1222 = vunpack.c.0.s8 %v1221
          %v1223 = vperm.slane %v1217, %v1222
          %v1225 = vunpack.c.l.s4 1934713408
          %v1226 = vunpack.c.0.s8 %v1225
          %v1227 = vperm.slane %v1219, %v1226
          %v1228 = vrot.slane %v1211, 4
          %v1229 = vsel %vm522, 0.0, %v1228
          %v1230 = vrot.slane %v1215, 4
          %v1231 = vsel %vm522, 0.0, %v1230
          %v1232 = vrot.slane %v1223, 4
          %v1233 = vsel %vm522, 0.0, %v1232
          %v1234 = vrot.slane %v1227, 4
          %v1235 = vsel %vm522, 0.0, %v1234
          %v1236 = vsel %vm522, %v1230, %v1211
          %v1238 = vunpack.c.l.s4 1983009808
          %v1239 = vunpack.c.0.s8 %v1238
          %v1240 = vperm.slane %v1236, %v1239
          %v1241 = vrot.slane %v1231, 4
          %v1242 = vsel %vm522, %v1241, %v1229
          %v1244 = vunpack.c.l.s4 1983009808
          %v1245 = vunpack.c.0.s8 %v1244
          %v1246 = vperm.slane %v1242, %v1245
          %v1247 = vsel %vm522, %v1234, %v1223
          %v1249 = vunpack.c.l.s4 1983009808
          %v1250 = vunpack.c.0.s8 %v1249
          %v1251 = vperm.slane %v1247, %v1250
          %v1252 = vrot.slane %v1235, 4
          %v1253 = vsel %vm522, %v1252, %v1233
          %v1255 = vunpack.c.l.s4 1983009808
          %v1256 = vunpack.c.0.s8 %v1255
          %v1257 = vperm.slane %v1253, %v1256
          %v1258 = vrot.slane %v1246, 4
          %v1259 = vsel %vm522, %v1258, %v1240
          %v1260 = vrot.slane %v1240, 4
          %v1261 = vsel %vm522, %v1246, %v1260
          %v1263 = vunpack.c.l.s4 1934713408
          %v1264 = vunpack.c.0.s8 %v1263
          %v1265 = vperm.slane %v1259, %v1264
          %v1267 = vunpack.c.l.s4 1934713408
          %v1268 = vunpack.c.0.s8 %v1267
          %v1269 = vperm.slane %v1261, %v1268
          %v1270 = vrot.slane %v1257, 4
          %v1271 = vsel %vm522, %v1270, %v1251
          %v1272 = vrot.slane %v1251, 4
          %v1273 = vsel %vm522, %v1257, %v1272
          %v1275 = vunpack.c.l.s4 1934713408
          %v1276 = vunpack.c.0.s8 %v1275
          %v1277 = vperm.slane %v1271, %v1276
          %v1279 = vunpack.c.l.s4 1934713408
          %v1280 = vunpack.c.0.s8 %v1279
          %v1281 = vperm.slane %v1273, %v1280
          %v1282 = vrot.slane %v1277, 4
          %v1283 = vsel %vm522, %v1282, %v1265
          %v1284 = vrot.slane %v1265, 4
          %v1285 = vsel %vm522, %v1277, %v1284
          %v1286 = vrot.slane %v1281, 4
          %v1287 = vsel %vm522, %v1286, %v1269
          %v1288 = vrot.slane %v1269, 4
          %v1289 = vsel %vm522, %v1281, %v1288
          %1291 = vrot.lane.b32.xlu0 %v1285, 32
          %v1292 = vpop.permute.xlu0 %1291
          %1295 = vrot.lane.b32.xlu0 %v1287, 64
          %v1296 = vpop.permute.xlu0 %1295
          %1299 = vrot.lane.b32.xlu0 %v1289, 96
          %v1300 = vpop.permute.xlu0 %1299
          %v1302 = vsel %vm758, %v1283, %v1292
          %vm1303 = vcmask 523264
          %v1304 = vsel %vm1303, %v1302, %v1296
          %vm1305 = vcmask 785408
          %v1306 = vsel %vm1305, %v1304, %v1300
          %1307 = vst [vmem:[%s364] sm:$0xff] %v1306
        $region60: #{tpu_custom_call.1} parent=35 // pred_fallthru
          _
        %s1308 = sand.u32 %s170, 1
        %s1309 = scalar_lea.sflag [#allocation8], %s1308
        %s1310 = sand.u32 %s170, 1
        %s1311 = smul.addr %s1310, 8
        %s1312 = scalar_lea.vmem [#allocation14], %s1311
        // Predicated region
        $region61: #{tpu_custom_call.1} parent=35 // pred_check
          %p1313 = pneg %p180
        $region62: #{tpu_custom_call.1} parent=35 // pred_check_branch
          %1315 = sbr.rel (%p1313) target = $region64
        $region63: #{tpu_custom_call.1} parent=35 // pred_region
          %1317 = vsyncadd %s1309, 0
          %s1318 = sadd.s32 %s33, %s32
          %s1319 = smul.addr %s1318, 8
          %s1320 = scalar_lea.hbm %s4, %s1319
          %s1322 = sshll.u32 %s1312, 4
          %s1323 = int_to_ptr.vmem [resolvable:$true] %s1322
          %s1324 = sshll.u32 %s1320, 4
          %s1325 = int_to_ptr.hbm [resolvable:$true] %s1324
          %1327 = dma.vmem_to_hbm [thread:$0]  %s1323, 128, %s1325, %s1309
        $region64: #{tpu_custom_call.1} parent=35 // pred_fallthru
          _
      $region36: #{tpu_custom_call.1} parent=5 // pred_fallthru
        _
      %p1328 = scmp.le.s32.totalorder 2, %s22
      // Predicated region
      $region65: #{tpu_custom_call.1} parent=5 // pred_check
        %p1329 = pneg %p1328
      $region66: #{tpu_custom_call.1} parent=5 // pred_check_branch
        %1331 = sbr.rel (%p1329) target = $region68
      $region67: #{tpu_custom_call.1} parent=5 // pred_region
        %s1332 = ssub.s32 %s22, 2
        // Predicated region
        $region69: #{tpu_custom_call.1} parent=67 // pred_check
          %p1333 = pneg %p186
        $region70: #{tpu_custom_call.1} parent=67 // pred_check_branch
          %1335 = sbr.rel (%p1333) target = $region72
        $region71: #{tpu_custom_call.1} parent=67 // pred_region
          %s1336 = sand.u32 %s171, 1
          %s1337 = scalar_lea.sflag [#allocation8], %s1336
          %s1338 = sand.u32 %s171, 1
          %s1339 = smul.addr %s1338, 8
          %s1340 = scalar_lea.vmem [#allocation14], %s1339
          %1342 = dma.done %s1337, 128
        $region72: #{tpu_custom_call.1} parent=67 // pred_fallthru
          _
      $region68: #{tpu_custom_call.1} parent=5 // pred_fallthru
        _
    $region6: #{tpu_custom_call.1} parent=1 // loop_footer
      %s26 = sadd.s32 1, %s22
    $region7: #{tpu_custom_call.1} parent=1 // loop_footer_branch
      %21 = sbr.rel target = $region3
    $region8: #{tpu_custom_call.1} parent=1 // loop_exit
      _
    %1343 = vsyncpa [#allocation7], 1
    %s1344 = scalar_lea.sflag [#allocation7], 1
    %1345 = vsyncpa %s1344, 1
    %1346 = vsyncpa [#allocation10], 1
    %s1347 = scalar_lea.sflag [#allocation10], 1
    %1348 = vsyncpa %s1347, 1
    %1349 = vsyncpa [#allocation13], 1
    %s1350 = scalar_lea.sflag [#allocation13], 1
    %1351 = vsyncpa %s1350, 1
    %1352 = vsyncpa [#allocation8], 1
    %s1353 = scalar_lea.sflag [#allocation8], 1
    %1354 = vsyncpa %s1353, 1

</llo_original>
